<compile_context>
chip_gen: v7x
topology: tpu7x:2x2x1
jax: 0.10.0
libtpu: 0.0.40
codegen_flags: <defaults>
</compile_context>

<pallas_src>
import functools
import math

import jax
import jax.numpy as jnp
from jax.experimental import pallas as pl
from jax.experimental.pallas import tpu as pltpu

_NEG_INF = -1e30                      # finite "minus inf" for masking (no inf-inf NaNs)
_VMEM_LIMIT = 48 * 1024 * 1024        # safe on v5e/v6e (128 MiB) and v7x (64 MiB)


def _default_tile():
    """256-wide tiles feed v6e/v7x's 2x256^2 MXUs; 128 is enough for v5e's 4x128^2."""
    try:
        kind = jax.devices()[0].device_kind.lower()
    except Exception:  # pragma: no cover - defensive
        return 128
    if ("v6" in kind) or ("v7" in kind) or ("trillium" in kind):
        return 256
    return 128


# ---------------------------------------------------------------------------
# Kernel 1: fused QKV projection -> packed lane-dense (B, T, C) bf16 q/k/v.
# ---------------------------------------------------------------------------
def _qkv_proj_kernel(x_ref, wqkv_ref, bqkv_ref, q_ref, k_ref, v_ref):
    # x_ref: (1, TT, C) f32 | wqkv_ref: (C, 3C) bf16 | bqkv_ref: (1, 3C) f32
    # q/k/v refs: (1, TT, C) bf16
    c = x_ref.shape[2]

    xb = x_ref[0].astype(jnp.bfloat16)                              # bf16 MXU input
    r = jnp.dot(xb, wqkv_ref[...],
                preferred_element_type=jnp.float32) + bqkv_ref[...]  # (TT, 3C) f32
    r = r.astype(jnp.bfloat16)                                       # cast once

    # Three full-width, lane-dense stores (column offsets are multiples of C).
    q_ref[0] = r[:, :c]
    k_ref[0] = r[:, c:2 * c]
    v_ref[0] = r[:, 2 * c:]


# ---------------------------------------------------------------------------
# Kernel 2: flash-style causal attention + fused output projection.
# grid = (B, num_q_tiles, num_kv_tiles); KV axis is the sequential reduction.
# Requires TQ == TK (square tiles) so the diagonal tile is exactly ki == qi.
# ---------------------------------------------------------------------------
def _flash_attn_kernel(q_ref, k_ref, v_ref, wp_ref, bp_ref, o_ref,
                       m_sc, l_sc, acc_sc):
    # q_ref: (1, TQ, C) bf16 (1/sqrt(D) already folded into Wq/bq)
    # k_ref/v_ref: (1, TK, C) bf16 | wp_ref: (C, C) bf16 | bp_ref: (1, C) f32
    # o_ref: (1, TQ, C) | scratch: m_sc/l_sc (H, TQ, 1) f32, acc_sc (H, TQ, D) f32
    n_heads, tq, d = acc_sc.shape
    tk = k_ref.shape[1]
    c = o_ref.shape[2]
    qi = pl.program_id(1)
    ki = pl.program_id(2)

    @pl.when(ki == 0)
    def _init():
        m_sc[...] = jnp.full_like(m_sc, _NEG_INF)
        l_sc[...] = jnp.zeros_like(l_sc)
        acc_sc[...] = jnp.zeros_like(acc_sc)

    def _update(masked):
        if masked:
            # Diagonal tile only (q_start == k_start since TQ == TK).
            row = jax.lax.broadcasted_iota(jnp.int32, (tq, tk), 0)
            col = jax.lax.broadcasted_iota(jnp.int32, (tq, tk), 1)
            mask = row >= col
        for h in range(n_heads):
            lo = h * d
            qh = q_ref[0, :, lo:lo + d]                      # (TQ, D) bf16
            kh = k_ref[0, :, lo:lo + d]                      # (TK, D) bf16
            vh = v_ref[0, :, lo:lo + d]                      # (TK, D) bf16

            # QK^T on the MXU ("NT" matmul, bf16 in, f32 accumulate).
            s = jax.lax.dot_general(qh, kh, (((1,), (1,)), ((), ())),
                                    preferred_element_type=jnp.float32)  # (TQ, TK)
            if masked:
                s = jnp.where(mask, s, _NEG_INF)

            # Online softmax update (f32).
            m_prev = m_sc[h]                                 # (TQ, 1)
            m_new = jnp.maximum(m_prev, jnp.max(s, axis=-1, keepdims=True))
            alpha = jnp.exp(m_prev - m_new)
            p = jnp.exp(s - m_new)                           # (TQ, TK) f32
            l_sc[h] = alpha * l_sc[h] + jnp.sum(p, axis=-1, keepdims=True)
            acc_sc[h] = alpha * acc_sc[h] + jnp.dot(
                p.astype(vh.dtype), vh, preferred_element_type=jnp.float32)
            m_sc[h] = m_new

    # Interior tiles (fully below the diagonal): no masking work at all.
    @pl.when(ki < qi)
    def _interior():
        _update(masked=False)

    # Diagonal tile: masked update, then finalize (no later KV tile contributes).
    @pl.when(ki == qi)
    def _diag_and_finalize():
        _update(masked=True)

        # Normalize (exact f32 divide) and apply the output projection, accumulating
        # head-by-head into a single (TQ, C) f32 value.
        out = jnp.zeros((tq, c), jnp.float32)
        for h in range(n_heads):
            inv_l = 1.0 / l_sc[h]                            # (TQ, 1) f32
            attn_h = (acc_sc[h] * inv_l).astype(wp_ref.dtype)  # (TQ, D) bf16
            out = out + jnp.dot(attn_h, wp_ref[h * d:(h + 1) * d, :],
                                preferred_element_type=jnp.float32)
        o_ref[0] = (out + bp_ref[...]).astype(o_ref.dtype)

    # Steps with ki > qi are fully above the diagonal: no DMA (clamped index_map),
    # no compute, no stores.


# ---------------------------------------------------------------------------
# Wrapper
# ---------------------------------------------------------------------------
def masked_causal_attention(x, prep, n_heads, *, q_tile=None, kv_tile=None,
                            vmem_limit_bytes=_VMEM_LIMIT):
    """x: (B, T, C) f32.  prep: dict from prepare_params().  Returns (B, T, C) f32."""
    B, T, C = x.shape
    assert C % n_heads == 0
    D = C // n_heads

    tile = _default_tile()
    q_tile = tile if q_tile is None else q_tile
    kv_tile = tile if kv_tile is None else kv_tile
    TQ = T if T <= q_tile else q_tile
    TK = T if T <= kv_tile else kv_tile
    assert TQ == TK, "causal tile clamp assumes square (TQ == TK) tiles"
    assert T % TQ == 0, "T must be a multiple of the tile size"

    # --- Kernel 1: fused QKV projection (packed lane-dense outputs) --------
    q, k, v = pl.pallas_call(
        _qkv_proj_kernel,
        out_shape=tuple(jax.ShapeDtypeStruct((B, T, C), jnp.bfloat16)
                        for _ in range(3)),
        grid_spec=pltpu.PrefetchScalarGridSpec(
            num_scalar_prefetch=0,
            grid=(B, T // TQ),
            in_specs=[
                pl.BlockSpec((1, TQ, C), lambda b, t: (b, t, 0)),        # x
                pl.BlockSpec((C, 3 * C), lambda b, t: (0, 0)),           # Wqkv
                pl.BlockSpec((1, 3 * C), lambda b, t: (0, 0)),           # bqkv
            ],
            out_specs=tuple(
                pl.BlockSpec((1, TQ, C), lambda b, t: (b, t, 0))
                for _ in range(3)),
        ),
        compiler_params=pltpu.CompilerParams(
            dimension_semantics=("parallel", "parallel"),
            vmem_limit_bytes=vmem_limit_bytes),
    )(x, prep["wqkv_t"], prep["bqkv"])

    # --- Kernel 2: flash attention + output projection ----------------------
    # Causal clamp: above-diagonal KV tiles re-use the diagonal block index, so
    # Pallas never issues a fresh DMA for them (compute is skipped in-kernel).
    kv_map = lambda b, qi, ki: (b, jnp.minimum(ki, qi), 0)

    out = pl.pallas_call(
        _flash_attn_kernel,
        out_shape=jax.ShapeDtypeStruct((B, T, C), x.dtype),
        grid_spec=pltpu.PrefetchScalarGridSpec(
            num_scalar_prefetch=0,
            grid=(B, T // TQ, T // TK),
            in_specs=[
                pl.BlockSpec((1, TQ, C), lambda b, qi, ki: (b, qi, 0)),  # q
                pl.BlockSpec((1, TK, C), kv_map),                        # k
                pl.BlockSpec((1, TK, C), kv_map),                        # v
                pl.BlockSpec((C, C), lambda b, qi, ki: (0, 0)),          # Wp
                pl.BlockSpec((1, C), lambda b, qi, ki: (0, 0)),          # bp
            ],
            out_specs=pl.BlockSpec((1, TQ, C), lambda b, qi, ki: (b, qi, 0)),
            scratch_shapes=[
                pltpu.VMEM((n_heads, TQ, 1), jnp.float32),   # running max  m
                pltpu.VMEM((n_heads, TQ, 1), jnp.float32),   # running sum  l
                pltpu.VMEM((n_heads, TQ, D), jnp.float32),   # output accumulator
            ],
        ),
        compiler_params=pltpu.CompilerParams(
            dimension_semantics=("parallel", "parallel", "arbitrary"),
            vmem_limit_bytes=vmem_limit_bytes),
    )(q, k, v, prep["wp_t"], prep["bp"])

    return out


def prepare_params(params, n_heads):
    """One-time parameter transform: fuse QKV, fold 1/sqrt(D) into Wq/bq,
    cast weights to bf16 (biases stay f32)."""
    C = params["wq_t"].shape[0]
    D = C // n_heads
    scale = 1.0 / math.sqrt(float(D))
    wqkv = jnp.concatenate(
        [params["wq_t"] * scale, params["wk_t"], params["wv_t"]], axis=1)   # (C, 3C)
    bqkv = jnp.concatenate(
        [params["bq"] * scale, params["bk"], params["bv"]], axis=1)          # (1, 3C)
    return dict(
        wqkv_t=wqkv.astype(jnp.bfloat16),
        bqkv=bqkv.astype(jnp.float32),
        wp_t=params["wp_t"].astype(jnp.bfloat16),                            # (C, C)
        bp=params["bp"].astype(jnp.float32),                                 # (1, C)
    )


def _init_params(key, C):
    """Deterministic init mimicking nn.Linear default U(-1/sqrt(C), 1/sqrt(C)).
    Weights are stored pre-transposed: (C_in, C_out), so y = x @ W_t + b."""
    bound = 1.0 / math.sqrt(C)
    ks = jax.random.split(key, 8)

    def u(k, shape):
        return jax.random.uniform(k, shape, jnp.float32, -bound, bound)

    return dict(
        wq_t=u(ks[0], (C, C)), bq=u(ks[1], (1, C)),
        wk_t=u(ks[2], (C, C)), bk=u(ks[3], (1, C)),
        wv_t=u(ks[4], (C, C)), bv=u(ks[5], (1, C)),
        wp_t=u(ks[6], (C, C)), bp=u(ks[7], (1, C)),
    )


def _reference(x, params, n_heads):
    """Pure-JAX f32 reference replicating the PyTorch forward (eval mode)."""
    B, T, C = x.shape
    D = C // n_heads
    q = (x @ params["wq_t"] + params["bq"]).reshape(B, T, n_heads, D).transpose(0, 2, 1, 3)
    k = (x @ params["wk_t"] + params["bk"]).reshape(B, T, n_heads, D).transpose(0, 2, 1, 3)
    v = (x @ params["wv_t"] + params["bv"]).reshape(B, T, n_heads, D).transpose(0, 2, 1, 3)
    w = jnp.einsum("bntd,bnsd->bnts", q, k) / math.sqrt(float(D))
    mask = jnp.tril(jnp.ones((T, T), dtype=bool))
    w = jnp.where(mask[None, None], w, -jnp.inf)
    p = jax.nn.softmax(w, axis=-1)
    att = jnp.einsum("bnts,bnsd->bntd", p, v).transpose(0, 2, 1, 3).reshape(B, T, C)
    return att @ params["wp_t"] + params["bp"]


if __name__ == "__main__":
    def run_case(B, T, n_heads, h_dim, q_tile, kv_tile):
        C = h_dim * n_heads
        key = jax.random.PRNGKey(0)
        kx, kp = jax.random.split(key)
        x = jax.random.normal(kx, (B, T, C), dtype=jnp.float32)
        params = _init_params(kp, C)
        prep = prepare_params(params, n_heads)
        fn = jax.jit(functools.partial(masked_causal_attention, n_heads=n_heads,
                                       q_tile=q_tile, kv_tile=kv_tile))
        out = jax.block_until_ready(fn(x, prep))
        ref = _reference(x, params, n_heads)
        assert out.shape == (B, T, C)
        # bf16 MXU inputs with f32 accumulation -> bf16-level tolerance.
        err = float(jnp.max(jnp.abs(out - ref)))
        assert bool(jnp.allclose(out, ref, atol=5e-2, rtol=5e-2)), \
            f"mismatch vs reference (max_abs_err={err})"

    # Small single-tile case (module defaults: h_dim=16, n_heads=2 -> C=32).
    run_case(B=2, T=8, n_heads=2, h_dim=16, q_tile=128, kv_tile=128)
    # Multi-tile case exercising the flash path: 2 q-tiles x 2 kv-tiles, D=64
    # (interior unmasked tile, diagonal masked tile, causal K/V clamp).
    run_case(B=2, T=256, n_heads=2, h_dim=64, q_tile=128, kv_tile=128)

    print("KERNEL_OK")
</pallas_src>

<mosaic_0001>
module attributes {stable_mosaic.version = 11 : i64} {
  func.func @_qkv_proj_kernel(%arg0: i32, %arg1: i32, %arg2: memref<1x8x32xf32, #tpu.memory_space<vmem>>, %arg3: memref<32x96xbf16, #tpu.memory_space<vmem>>, %arg4: memref<1x96xf32, #tpu.memory_space<vmem>>, %arg5: memref<1x8x32xbf16, #tpu.memory_space<vmem>>, %arg6: memref<1x8x32xbf16, #tpu.memory_space<vmem>>, %arg7: memref<1x8x32xbf16, #tpu.memory_space<vmem>>) attributes {dimension_semantics = [#tpu.dimension_semantics<parallel>, #tpu.dimension_semantics<parallel>], iteration_bounds = array<i64: 2, 1>, scalar_prefetch = 0 : i64, scratch_operands = 0 : i64, tpu.core_type = #tpu.core_type<tc>, window_params = [{transform_indices = @transform_0, window_bounds = array<i64: 1, 8, 32>}, {pipeline_mode = #tpu.pipeline_mode<synchronous>, transform_indices = @transform_1, window_bounds = array<i64: 32, 96>}, {pipeline_mode = #tpu.pipeline_mode<synchronous>, transform_indices = @transform_2, window_bounds = array<i64: 1, 96>}, {transform_indices = @transform_3, window_bounds = array<i64: 1, 8, 32>}, {transform_indices = @transform_4, window_bounds = array<i64: 1, 8, 32>}, {transform_indices = @transform_5, window_bounds = array<i64: 1, 8, 32>}]} {
    %c0 = arith.constant 0 : index
    %c0_0 = arith.constant 0 : index
    %c0_1 = arith.constant 0 : index
    %0 = vector.load %arg2[%c0, %c0_0, %c0_1] : memref<1x8x32xf32, #tpu.memory_space<vmem>>, vector<1x8x32xf32>
    %1 = vector.shape_cast %0 : vector<1x8x32xf32> to vector<8x32xf32>
    %2 = arith.truncf %1 : vector<8x32xf32> to vector<8x32xbf16>
    %c0_2 = arith.constant 0 : index
    %c0_3 = arith.constant 0 : index
    %3 = vector.load %arg3[%c0_2, %c0_3] : memref<32x96xbf16, #tpu.memory_space<vmem>>, vector<32x96xbf16>
    %cst = arith.constant dense<0.000000e+00> : vector<8x96xf32>
    %4 = tpu.matmul %2, %3, %cst {dimension_numbers = #tpu.dot_dimension_numbers<[1], [0], [0], [1], [0, 0, 1, 1], [], []>} : vector<8x32xbf16>, vector<32x96xbf16>, vector<8x96xf32> -> vector<8x96xf32>
    %c0_4 = arith.constant 0 : index
    %c0_5 = arith.constant 0 : index
    %5 = vector.load %arg4[%c0_4, %c0_5] : memref<1x96xf32, #tpu.memory_space<vmem>>, vector<1x96xf32>
    %6 = vector.broadcast %5 : vector<1x96xf32> to vector<8x96xf32>
    %7 = arith.addf %4, %6 : vector<8x96xf32>
    %8 = arith.truncf %7 : vector<8x96xf32> to vector<8x96xbf16>
    %9 = vector.extract_strided_slice %8 {offsets = [0, 0], sizes = [8, 32], strides = [1, 1]} : vector<8x96xbf16> to vector<8x32xbf16>
    %c0_6 = arith.constant 0 : index
    %c0_7 = arith.constant 0 : index
    %c0_8 = arith.constant 0 : index
    %10 = vector.load %arg5[%c0_6, %c0_7, %c0_8] : memref<1x8x32xbf16, #tpu.memory_space<vmem>>, vector<1x8x32xbf16>
    %11 = vector.shape_cast %10 : vector<1x8x32xbf16> to vector<8x32xbf16>
    %12 = vector.shape_cast %9 : vector<8x32xbf16> to vector<1x8x32xbf16>
    tpu.vector_store %arg5[%c0_6, %c0_7, %c0_8], %12 {strides = array<i32>} : memref<1x8x32xbf16, #tpu.memory_space<vmem>>, vector<1x8x32xbf16>,
    %13 = vector.extract_strided_slice %8 {offsets = [0, 32], sizes = [8, 32], strides = [1, 1]} : vector<8x96xbf16> to vector<8x32xbf16>
    %c0_9 = arith.constant 0 : index
    %c0_10 = arith.constant 0 : index
    %c0_11 = arith.constant 0 : index
    %14 = vector.load %arg6[%c0_9, %c0_10, %c0_11] : memref<1x8x32xbf16, #tpu.memory_space<vmem>>, vector<1x8x32xbf16>
    %15 = vector.shape_cast %14 : vector<1x8x32xbf16> to vector<8x32xbf16>
    %16 = vector.shape_cast %13 : vector<8x32xbf16> to vector<1x8x32xbf16>
    tpu.vector_store %arg6[%c0_9, %c0_10, %c0_11], %16 {strides = array<i32>} : memref<1x8x32xbf16, #tpu.memory_space<vmem>>, vector<1x8x32xbf16>,
    %17 = vector.extract_strided_slice %8 {offsets = [0, 64], sizes = [8, 32], strides = [1, 1]} : vector<8x96xbf16> to vector<8x32xbf16>
    %c0_12 = arith.constant 0 : index
    %c0_13 = arith.constant 0 : index
    %c0_14 = arith.constant 0 : index
    %18 = vector.load %arg7[%c0_12, %c0_13, %c0_14] : memref<1x8x32xbf16, #tpu.memory_space<vmem>>, vector<1x8x32xbf16>
    %19 = vector.shape_cast %18 : vector<1x8x32xbf16> to vector<8x32xbf16>
    %20 = vector.shape_cast %17 : vector<8x32xbf16> to vector<1x8x32xbf16>
    tpu.vector_store %arg7[%c0_12, %c0_13, %c0_14], %20 {strides = array<i32>} : memref<1x8x32xbf16, #tpu.memory_space<vmem>>, vector<1x8x32xbf16>,
    return
  }
  func.func @transform_0(%arg0: i32, %arg1: i32) -> (i32, i32, i32) {
    %c0_i32 = arith.constant 0 : i32
    %c0_i32_0 = arith.constant 0 : i32
    return %arg0, %arg1, %c0_i32 : i32, i32, i32
  }
  func.func @transform_1(%arg0: i32, %arg1: i32) -> (i32, i32) {
    %c0_i32 = arith.constant 0 : i32
    %c0_i32_0 = arith.constant 0 : i32
    %c0_i32_1 = arith.constant 0 : i32
    return %c0_i32, %c0_i32_0 : i32, i32
  }
  func.func @transform_2(%arg0: i32, %arg1: i32) -> (i32, i32) {
    %c0_i32 = arith.constant 0 : i32
    %c0_i32_0 = arith.constant 0 : i32
    %c0_i32_1 = arith.constant 0 : i32
    return %c0_i32, %c0_i32_0 : i32, i32
  }
  func.func @transform_3(%arg0: i32, %arg1: i32) -> (i32, i32, i32) {
    %c0_i32 = arith.constant 0 : i32
    %c0_i32_0 = arith.constant 0 : i32
    return %arg0, %arg1, %c0_i32 : i32, i32, i32
  }
  func.func @transform_4(%arg0: i32, %arg1: i32) -> (i32, i32, i32) {
    %c0_i32 = arith.constant 0 : i32
    %c0_i32_0 = arith.constant 0 : i32
    return %arg0, %arg1, %c0_i32 : i32, i32, i32
  }
  func.func @transform_5(%arg0: i32, %arg1: i32) -> (i32, i32, i32) {
    %c0_i32 = arith.constant 0 : i32
    %c0_i32_0 = arith.constant 0 : i32
    return %arg0, %arg1, %c0_i32 : i32, i32, i32
  }
}

module attributes {stable_mosaic.version = 11 : i64} {
  func.func @_flash_attn_kernel(%arg0: i32, %arg1: i32, %arg2: i32, %arg3: memref<1x8x32xbf16, #tpu.memory_space<vmem>>, %arg4: memref<1x8x32xbf16, #tpu.memory_space<vmem>>, %arg5: memref<1x8x32xbf16, #tpu.memory_space<vmem>>, %arg6: memref<32x32xbf16, #tpu.memory_space<vmem>>, %arg7: memref<1x32xf32, #tpu.memory_space<vmem>>, %arg8: memref<1x8x32xf32, #tpu.memory_space<vmem>>, %arg9: memref<2x8x1xf32, #tpu.memory_space<vmem>>, %arg10: memref<2x8x1xf32, #tpu.memory_space<vmem>>, %arg11: memref<2x8x16xf32, #tpu.memory_space<vmem>>) attributes {dimension_semantics = [#tpu.dimension_semantics<parallel>, #tpu.dimension_semantics<parallel>, #tpu.dimension_semantics<arbitrary>], iteration_bounds = array<i64: 2, 1, 1>, scalar_prefetch = 0 : i64, scratch_operands = 3 : i64, tpu.core_type = #tpu.core_type<tc>, window_params = [{transform_indices = @transform_0, window_bounds = array<i64: 1, 8, 32>}, {transform_indices = @transform_1, window_bounds = array<i64: 1, 8, 32>}, {transform_indices = @transform_2, window_bounds = array<i64: 1, 8, 32>}, {pipeline_mode = #tpu.pipeline_mode<synchronous>, transform_indices = @transform_3, window_bounds = array<i64: 32, 32>}, {pipeline_mode = #tpu.pipeline_mode<synchronous>, transform_indices = @transform_4, window_bounds = array<i64: 1, 32>}, {transform_indices = @transform_5, window_bounds = array<i64: 1, 8, 32>}]} {
    %c0_i32 = arith.constant 0 : i32
    %0 = arith.cmpi eq, %arg2, %c0_i32 : i32
    %1 = arith.extui %0 : i1 to i32
    %c0_i32_0 = arith.constant 0 : i32
    %2 = arith.cmpi ne, %1, %c0_i32_0 : i32
    scf.if %2 {
      %cst = arith.constant -1.000000e+30 : f32
      %9 = vector.broadcast %cst : f32 to vector<2x8x1xf32>
      %c0 = arith.constant 0 : index
      %c0_3 = arith.constant 0 : index
      %c0_4 = arith.constant 0 : index
      %10 = vector.load %arg9[%c0, %c0_3, %c0_4] : memref<2x8x1xf32, #tpu.memory_space<vmem>>, vector<2x8x1xf32>
      tpu.vector_store %arg9[%c0, %c0_3, %c0_4], %9 {strides = array<i32>} : memref<2x8x1xf32, #tpu.memory_space<vmem>>, vector<2x8x1xf32>,
      %cst_5 = arith.constant 0.000000e+00 : f32
      %11 = vector.broadcast %cst_5 : f32 to vector<2x8x1xf32>
      %c0_6 = arith.constant 0 : index
      %c0_7 = arith.constant 0 : index
      %c0_8 = arith.constant 0 : index
      %12 = vector.load %arg10[%c0_6, %c0_7, %c0_8] : memref<2x8x1xf32, #tpu.memory_space<vmem>>, vector<2x8x1xf32>
      tpu.vector_store %arg10[%c0_6, %c0_7, %c0_8], %11 {strides = array<i32>} : memref<2x8x1xf32, #tpu.memory_space<vmem>>, vector<2x8x1xf32>,
      %cst_9 = arith.constant 0.000000e+00 : f32
      %13 = vector.broadcast %cst_9 : f32 to vector<2x8x16xf32>
      %c0_10 = arith.constant 0 : index
      %c0_11 = arith.constant 0 : index
      %c0_12 = arith.constant 0 : index
      %14 = vector.load %arg11[%c0_10, %c0_11, %c0_12] : memref<2x8x16xf32, #tpu.memory_space<vmem>>, vector<2x8x16xf32>
      tpu.vector_store %arg11[%c0_10, %c0_11, %c0_12], %13 {strides = array<i32>} : memref<2x8x16xf32, #tpu.memory_space<vmem>>, vector<2x8x16xf32>,
    } else {
    }
    %3 = arith.cmpi slt, %arg2, %arg1 : i32
    %4 = arith.extui %3 : i1 to i32
    %c0_i32_1 = arith.constant 0 : i32
    %5 = arith.cmpi ne, %4, %c0_i32_1 : i32
    scf.if %5 {
      %c0 = arith.constant 0 : index
      %c0_3 = arith.constant 0 : index
      %c0_4 = arith.constant 0 : index
      %9 = vector.load %arg3[%c0, %c0_3, %c0_4] : memref<1x8x32xbf16, #tpu.memory_space<vmem>>, vector<1x8x16xbf16>
      %10 = vector.shape_cast %9 : vector<1x8x16xbf16> to vector<8x16xbf16>
      %c0_5 = arith.constant 0 : index
      %c0_6 = arith.constant 0 : index
      %c0_7 = arith.constant 0 : index
      %11 = vector.load %arg4[%c0_5, %c0_6, %c0_7] : memref<1x8x32xbf16, #tpu.memory_space<vmem>>, vector<1x8x16xbf16>
      %12 = vector.shape_cast %11 : vector<1x8x16xbf16> to vector<8x16xbf16>
      %c0_8 = arith.constant 0 : index
      %c0_9 = arith.constant 0 : index
      %c0_10 = arith.constant 0 : index
      %13 = vector.load %arg5[%c0_8, %c0_9, %c0_10] : memref<1x8x32xbf16, #tpu.memory_space<vmem>>, vector<1x8x16xbf16>
      %14 = vector.shape_cast %13 : vector<1x8x16xbf16> to vector<8x16xbf16>
      %cst = arith.constant dense<0.000000e+00> : vector<8x8xf32>
      %15 = tpu.matmul %10, %12, %cst {dimension_numbers = #tpu.dot_dimension_numbers<[1], [1], [0], [0], [0, 0, 1, 0], [], []>} : vector<8x16xbf16>, vector<8x16xbf16>, vector<8x8xf32> -> vector<8x8xf32>
      %c0_11 = arith.constant 0 : index
      %c0_12 = arith.constant 0 : index
      %c0_13 = arith.constant 0 : index
      %16 = vector.load %arg9[%c0_11, %c0_12, %c0_13] : memref<2x8x1xf32, #tpu.memory_space<vmem>>, vector<1x8x1xf32>
      %17 = vector.shape_cast %16 : vector<1x8x1xf32> to vector<8x1xf32>
      %cst_14 = arith.constant dense<0xFF800000> : vector<8xf32>
      %18 = vector.multi_reduction <maximumf>, %15, %cst_14 [1] : vector<8x8xf32> to vector<8xf32>
      %19 = vector.shape_cast %18 : vector<8xf32> to vector<8x1xf32>
      %20 = arith.maximumf %17, %19 : vector<8x1xf32>
      %21 = arith.subf %17, %20 : vector<8x1xf32>
      %22 = math.exp %21 : vector<8x1xf32>
      %23 = vector.broadcast %20 : vector<8x1xf32> to vector<8x8xf32>
      %24 = arith.subf %15, %23 : vector<8x8xf32>
      %25 = math.exp %24 : vector<8x8xf32>
      %c0_15 = arith.constant 0 : index
      %c0_16 = arith.constant 0 : index
      %c0_17 = arith.constant 0 : index
      %26 = vector.load %arg10[%c0_15, %c0_16, %c0_17] : memref<2x8x1xf32, #tpu.memory_space<vmem>>, vector<1x8x1xf32>
      %27 = vector.shape_cast %26 : vector<1x8x1xf32> to vector<8x1xf32>
      %28 = arith.mulf %22, %27 : vector<8x1xf32>
      %cst_18 = arith.constant dense<0.000000e+00> : vector<8xf32>
      %29 = vector.multi_reduction <add>, %25, %cst_18 [1] : vector<8x8xf32> to vector<8xf32>
      %30 = vector.shape_cast %29 : vector<8xf32> to vector<8x1xf32>
      %31 = arith.addf %28, %30 : vector<8x1xf32>
      %c0_19 = arith.constant 0 : index
      %c0_20 = arith.constant 0 : index
      %c0_21 = arith.constant 0 : index
      %32 = vector.load %arg10[%c0_19, %c0_20, %c0_21] : memref<2x8x1xf32, #tpu.memory_space<vmem>>, vector<1x8x1xf32>
      %33 = vector.shape_cast %32 : vector<1x8x1xf32> to vector<8x1xf32>
      %34 = vector.shape_cast %31 : vector<8x1xf32> to vector<1x8x1xf32>
      tpu.vector_store %arg10[%c0_19, %c0_20, %c0_21], %34 {strides = array<i32>} : memref<2x8x1xf32, #tpu.memory_space<vmem>>, vector<1x8x1xf32>,
      %c0_22 = arith.constant 0 : index
      %c0_23 = arith.constant 0 : index
      %c0_24 = arith.constant 0 : index
      %35 = vector.load %arg11[%c0_22, %c0_23, %c0_24] : memref<2x8x16xf32, #tpu.memory_space<vmem>>, vector<1x8x16xf32>
      %36 = vector.shape_cast %35 : vector<1x8x16xf32> to vector<8x16xf32>
      %37 = vector.broadcast %22 : vector<8x1xf32> to vector<8x16xf32>
      %38 = arith.mulf %37, %36 : vector<8x16xf32>
      %39 = arith.truncf %25 : vector<8x8xf32> to vector<8x8xbf16>
      %cst_25 = arith.constant dense<0.000000e+00> : vector<8x16xf32>
      %40 = tpu.matmul %39, %14, %cst_25 {dimension_numbers = #tpu.dot_dimension_numbers<[1], [0], [0], [1], [0, 0, 1, 1], [], []>} : vector<8x8xbf16>, vector<8x16xbf16>, vector<8x16xf32> -> vector<8x16xf32>
      %41 = arith.addf %38, %40 : vector<8x16xf32>
      %c0_26 = arith.constant 0 : index
      %c0_27 = arith.constant 0 : index
      %c0_28 = arith.constant 0 : index
      %42 = vector.load %arg11[%c0_26, %c0_27, %c0_28] : memref<2x8x16xf32, #tpu.memory_space<vmem>>, vector<1x8x16xf32>
      %43 = vector.shape_cast %42 : vector<1x8x16xf32> to vector<8x16xf32>
      %44 = vector.shape_cast %41 : vector<8x16xf32> to vector<1x8x16xf32>
      tpu.vector_store %arg11[%c0_26, %c0_27, %c0_28], %44 {strides = array<i32>} : memref<2x8x16xf32, #tpu.memory_space<vmem>>, vector<1x8x16xf32>,
      %c0_29 = arith.constant 0 : index
      %c0_30 = arith.constant 0 : index
      %c0_31 = arith.constant 0 : index
      %45 = vector.load %arg9[%c0_29, %c0_30, %c0_31] : memref<2x8x1xf32, #tpu.memory_space<vmem>>, vector<1x8x1xf32>
      %46 = vector.shape_cast %45 : vector<1x8x1xf32> to vector<8x1xf32>
      %47 = vector.shape_cast %20 : vector<8x1xf32> to vector<1x8x1xf32>
      tpu.vector_store %arg9[%c0_29, %c0_30, %c0_31], %47 {strides = array<i32>} : memref<2x8x1xf32, #tpu.memory_space<vmem>>, vector<1x8x1xf32>,
      %c0_32 = arith.constant 0 : index
      %c0_33 = arith.constant 0 : index
      %c16 = arith.constant 16 : index
      %48 = vector.load %arg3[%c0_32, %c0_33, %c16] : memref<1x8x32xbf16, #tpu.memory_space<vmem>>, vector<1x8x16xbf16>
      %49 = vector.shape_cast %48 : vector<1x8x16xbf16> to vector<8x16xbf16>
      %c0_34 = arith.constant 0 : index
      %c0_35 = arith.constant 0 : index
      %c16_36 = arith.constant 16 : index
      %50 = vector.load %arg4[%c0_34, %c0_35, %c16_36] : memref<1x8x32xbf16, #tpu.memory_space<vmem>>, vector<1x8x16xbf16>
      %51 = vector.shape_cast %50 : vector<1x8x16xbf16> to vector<8x16xbf16>
      %c0_37 = arith.constant 0 : index
      %c0_38 = arith.constant 0 : index
      %c16_39 = arith.constant 16 : index
      %52 = vector.load %arg5[%c0_37, %c0_38, %c16_39] : memref<1x8x32xbf16, #tpu.memory_space<vmem>>, vector<1x8x16xbf16>
      %53 = vector.shape_cast %52 : vector<1x8x16xbf16> to vector<8x16xbf16>
      %cst_40 = arith.constant dense<0.000000e+00> : vector<8x8xf32>
      %54 = tpu.matmul %49, %51, %cst_40 {dimension_numbers = #tpu.dot_dimension_numbers<[1], [1], [0], [0], [0, 0, 1, 0], [], []>} : vector<8x16xbf16>, vector<8x16xbf16>, vector<8x8xf32> -> vector<8x8xf32>
      %c1 = arith.constant 1 : index
      %c0_41 = arith.constant 0 : index
      %c0_42 = arith.constant 0 : index
      %55 = vector.load %arg9[%c1, %c0_41, %c0_42] : memref<2x8x1xf32, #tpu.memory_space<vmem>>, vector<1x8x1xf32>
      %56 = vector.shape_cast %55 : vector<1x8x1xf32> to vector<8x1xf32>
      %cst_43 = arith.constant dense<0xFF800000> : vector<8xf32>
      %57 = vector.multi_reduction <maximumf>, %54, %cst_43 [1] : vector<8x8xf32> to vector<8xf32>
      %58 = vector.shape_cast %57 : vector<8xf32> to vector<8x1xf32>
      %59 = arith.maximumf %56, %58 : vector<8x1xf32>
      %60 = arith.subf %56, %59 : vector<8x1xf32>
      %61 = math.exp %60 : vector<8x1xf32>
      %62 = vector.broadcast %59 : vector<8x1xf32> to vector<8x8xf32>
      %63 = arith.subf %54, %62 : vector<8x8xf32>
      %64 = math.exp %63 : vector<8x8xf32>
      %c1_44 = arith.constant 1 : index
      %c0_45 = arith.constant 0 : index
      %c0_46 = arith.constant 0 : index
      %65 = vector.load %arg10[%c1_44, %c0_45, %c0_46] : memref<2x8x1xf32, #tpu.memory_space<vmem>>, vector<1x8x1xf32>
      %66 = vector.shape_cast %65 : vector<1x8x1xf32> to vector<8x1xf32>
      %67 = arith.mulf %61, %66 : vector<8x1xf32>
      %cst_47 = arith.constant dense<0.000000e+00> : vector<8xf32>
      %68 = vector.multi_reduction <add>, %64, %cst_47 [1] : vector<8x8xf32> to vector<8xf32>
      %69 = vector.shape_cast %68 : vector<8xf32> to vector<8x1xf32>
      %70 = arith.addf %67, %69 : vector<8x1xf32>
      %c1_48 = arith.constant 1 : index
      %c0_49 = arith.constant 0 : index
      %c0_50 = arith.constant 0 : index
      %71 = vector.load %arg10[%c1_48, %c0_49, %c0_50] : memref<2x8x1xf32, #tpu.memory_space<vmem>>, vector<1x8x1xf32>
      %72 = vector.shape_cast %71 : vector<1x8x1xf32> to vector<8x1xf32>
      %73 = vector.shape_cast %70 : vector<8x1xf32> to vector<1x8x1xf32>
      tpu.vector_store %arg10[%c1_48, %c0_49, %c0_50], %73 {strides = array<i32>} : memref<2x8x1xf32, #tpu.memory_space<vmem>>, vector<1x8x1xf32>,
      %c1_51 = arith.constant 1 : index
      %c0_52 = arith.constant 0 : index
      %c0_53 = arith.constant 0 : index
      %74 = vector.load %arg11[%c1_51, %c0_52, %c0_53] : memref<2x8x16xf32, #tpu.memory_space<vmem>>, vector<1x8x16xf32>
      %75 = vector.shape_cast %74 : vector<1x8x16xf32> to vector<8x16xf32>
      %76 = vector.broadcast %61 : vector<8x1xf32> to vector<8x16xf32>
      %77 = arith.mulf %76, %75 : vector<8x16xf32>
      %78 = arith.truncf %64 : vector<8x8xf32> to vector<8x8xbf16>
      %cst_54 = arith.constant dense<0.000000e+00> : vector<8x16xf32>
      %79 = tpu.matmul %78, %53, %cst_54 {dimension_numbers = #tpu.dot_dimension_numbers<[1], [0], [0], [1], [0, 0, 1, 1], [], []>} : vector<8x8xbf16>, vector<8x16xbf16>, vector<8x16xf32> -> vector<8x16xf32>
      %80 = arith.addf %77, %79 : vector<8x16xf32>
      %c1_55 = arith.constant 1 : index
      %c0_56 = arith.constant 0 : index
      %c0_57 = arith.constant 0 : index
      %81 = vector.load %arg11[%c1_55, %c0_56, %c0_57] : memref<2x8x16xf32, #tpu.memory_space<vmem>>, vector<1x8x16xf32>
      %82 = vector.shape_cast %81 : vector<1x8x16xf32> to vector<8x16xf32>
      %83 = vector.shape_cast %80 : vector<8x16xf32> to vector<1x8x16xf32>
      tpu.vector_store %arg11[%c1_55, %c0_56, %c0_57], %83 {strides = array<i32>} : memref<2x8x16xf32, #tpu.memory_space<vmem>>, vector<1x8x16xf32>,
      %c1_58 = arith.constant 1 : index
      %c0_59 = arith.constant 0 : index
      %c0_60 = arith.constant 0 : index
      %84 = vector.load %arg9[%c1_58, %c0_59, %c0_60] : memref<2x8x1xf32, #tpu.memory_space<vmem>>, vector<1x8x1xf32>
      %85 = vector.shape_cast %84 : vector<1x8x1xf32> to vector<8x1xf32>
      %86 = vector.shape_cast %59 : vector<8x1xf32> to vector<1x8x1xf32>
      tpu.vector_store %arg9[%c1_58, %c0_59, %c0_60], %86 {strides = array<i32>} : memref<2x8x1xf32, #tpu.memory_space<vmem>>, vector<1x8x1xf32>,
    } else {
    }
    %6 = arith.cmpi eq, %arg2, %arg1 : i32
    %7 = arith.extui %6 : i1 to i32
    %c0_i32_2 = arith.constant 0 : i32
    %8 = arith.cmpi ne, %7, %c0_i32_2 : i32
    scf.if %8 {
      %9 = tpu.iota {dimensions = array<i32: 0>} : vector<8x8xi32>
      %10 = tpu.iota {dimensions = array<i32: 1>} : vector<8x8xi32>
      %11 = arith.cmpi sge, %9, %10 : vector<8x8xi32>
      %c0 = arith.constant 0 : index
      %c0_3 = arith.constant 0 : index
      %c0_4 = arith.constant 0 : index
      %12 = vector.load %arg3[%c0, %c0_3, %c0_4] : memref<1x8x32xbf16, #tpu.memory_space<vmem>>, vector<1x8x16xbf16>
      %13 = vector.shape_cast %12 : vector<1x8x16xbf16> to vector<8x16xbf16>
      %c0_5 = arith.constant 0 : index
      %c0_6 = arith.constant 0 : index
      %c0_7 = arith.constant 0 : index
      %14 = vector.load %arg4[%c0_5, %c0_6, %c0_7] : memref<1x8x32xbf16, #tpu.memory_space<vmem>>, vector<1x8x16xbf16>
      %15 = vector.shape_cast %14 : vector<1x8x16xbf16> to vector<8x16xbf16>
      %c0_8 = arith.constant 0 : index
      %c0_9 = arith.constant 0 : index
      %c0_10 = arith.constant 0 : index
      %16 = vector.load %arg5[%c0_8, %c0_9, %c0_10] : memref<1x8x32xbf16, #tpu.memory_space<vmem>>, vector<1x8x16xbf16>
      %17 = vector.shape_cast %16 : vector<1x8x16xbf16> to vector<8x16xbf16>
      %cst = arith.constant dense<0.000000e+00> : vector<8x8xf32>
      %18 = tpu.matmul %13, %15, %cst {dimension_numbers = #tpu.dot_dimension_numbers<[1], [1], [0], [0], [0, 0, 1, 0], [], []>} : vector<8x16xbf16>, vector<8x16xbf16>, vector<8x8xf32> -> vector<8x8xf32>
      %cst_11 = arith.constant -1.000000e+30 : f32
      %19 = vector.broadcast %cst_11 : f32 to vector<8x8xf32>
      %20 = arith.select %11, %18, %19 : vector<8x8xi1>, vector<8x8xf32>
      %c0_12 = arith.constant 0 : index
      %c0_13 = arith.constant 0 : index
      %c0_14 = arith.constant 0 : index
      %21 = vector.load %arg9[%c0_12, %c0_13, %c0_14] : memref<2x8x1xf32, #tpu.memory_space<vmem>>, vector<1x8x1xf32>
      %22 = vector.shape_cast %21 : vector<1x8x1xf32> to vector<8x1xf32>
      %cst_15 = arith.constant dense<0xFF800000> : vector<8xf32>
      %23 = vector.multi_reduction <maximumf>, %20, %cst_15 [1] : vector<8x8xf32> to vector<8xf32>
      %24 = vector.shape_cast %23 : vector<8xf32> to vector<8x1xf32>
      %25 = arith.maximumf %22, %24 : vector<8x1xf32>
      %26 = arith.subf %22, %25 : vector<8x1xf32>
      %27 = math.exp %26 : vector<8x1xf32>
      %28 = vector.broadcast %25 : vector<8x1xf32> to vector<8x8xf32>
      %29 = arith.subf %20, %28 : vector<8x8xf32>
      %30 = math.exp %29 : vector<8x8xf32>
      %c0_16 = arith.constant 0 : index
      %c0_17 = arith.constant 0 : index
      %c0_18 = arith.constant 0 : index
      %31 = vector.load %arg10[%c0_16, %c0_17, %c0_18] : memref<2x8x1xf32, #tpu.memory_space<vmem>>, vector<1x8x1xf32>
      %32 = vector.shape_cast %31 : vector<1x8x1xf32> to vector<8x1xf32>
      %33 = arith.mulf %27, %32 : vector<8x1xf32>
      %cst_19 = arith.constant dense<0.000000e+00> : vector<8xf32>
      %34 = vector.multi_reduction <add>, %30, %cst_19 [1] : vector<8x8xf32> to vector<8xf32>
      %35 = vector.shape_cast %34 : vector<8xf32> to vector<8x1xf32>
      %36 = arith.addf %33, %35 : vector<8x1xf32>
      %c0_20 = arith.constant 0 : index
      %c0_21 = arith.constant 0 : index
      %c0_22 = arith.constant 0 : index
      %37 = vector.load %arg10[%c0_20, %c0_21, %c0_22] : memref<2x8x1xf32, #tpu.memory_space<vmem>>, vector<1x8x1xf32>
      %38 = vector.shape_cast %37 : vector<1x8x1xf32> to vector<8x1xf32>
      %39 = vector.shape_cast %36 : vector<8x1xf32> to vector<1x8x1xf32>
      tpu.vector_store %arg10[%c0_20, %c0_21, %c0_22], %39 {strides = array<i32>} : memref<2x8x1xf32, #tpu.memory_space<vmem>>, vector<1x8x1xf32>,
      %c0_23 = arith.constant 0 : index
      %c0_24 = arith.constant 0 : index
      %c0_25 = arith.constant 0 : index
      %40 = vector.load %arg11[%c0_23, %c0_24, %c0_25] : memref<2x8x16xf32, #tpu.memory_space<vmem>>, vector<1x8x16xf32>
      %41 = vector.shape_cast %40 : vector<1x8x16xf32> to vector<8x16xf32>
      %42 = vector.broadcast %27 : vector<8x1xf32> to vector<8x16xf32>
      %43 = arith.mulf %42, %41 : vector<8x16xf32>
      %44 = arith.truncf %30 : vector<8x8xf32> to vector<8x8xbf16>
      %cst_26 = arith.constant dense<0.000000e+00> : vector<8x16xf32>
      %45 = tpu.matmul %44, %17, %cst_26 {dimension_numbers = #tpu.dot_dimension_numbers<[1], [0], [0], [1], [0, 0, 1, 1], [], []>} : vector<8x8xbf16>, vector<8x16xbf16>, vector<8x16xf32> -> vector<8x16xf32>
      %46 = arith.addf %43, %45 : vector<8x16xf32>
      %c0_27 = arith.constant 0 : index
      %c0_28 = arith.constant 0 : index
      %c0_29 = arith.constant 0 : index
      %47 = vector.load %arg11[%c0_27, %c0_28, %c0_29] : memref<2x8x16xf32, #tpu.memory_space<vmem>>, vector<1x8x16xf32>
      %48 = vector.shape_cast %47 : vector<1x8x16xf32> to vector<8x16xf32>
      %49 = vector.shape_cast %46 : vector<8x16xf32> to vector<1x8x16xf32>
      tpu.vector_store %arg11[%c0_27, %c0_28, %c0_29], %49 {strides = array<i32>} : memref<2x8x16xf32, #tpu.memory_space<vmem>>, vector<1x8x16xf32>,
      %c0_30 = arith.constant 0 : index
      %c0_31 = arith.constant 0 : index
      %c0_32 = arith.constant 0 : index
      %50 = vector.load %arg9[%c0_30, %c0_31, %c0_32] : memref<2x8x1xf32, #tpu.memory_space<vmem>>, vector<1x8x1xf32>
      %51 = vector.shape_cast %50 : vector<1x8x1xf32> to vector<8x1xf32>
      %52 = vector.shape_cast %25 : vector<8x1xf32> to vector<1x8x1xf32>
      tpu.vector_store %arg9[%c0_30, %c0_31, %c0_32], %52 {strides = array<i32>} : memref<2x8x1xf32, #tpu.memory_space<vmem>>, vector<1x8x1xf32>,
      %c0_33 = arith.constant 0 : index
      %c0_34 = arith.constant 0 : index
      %c16 = arith.constant 16 : index
      %53 = vector.load %arg3[%c0_33, %c0_34, %c16] : memref<1x8x32xbf16, #tpu.memory_space<vmem>>, vector<1x8x16xbf16>
      %54 = vector.shape_cast %53 : vector<1x8x16xbf16> to vector<8x16xbf16>
      %c0_35 = arith.constant 0 : index
      %c0_36 = arith.constant 0 : index
      %c16_37 = arith.constant 16 : index
      %55 = vector.load %arg4[%c0_35, %c0_36, %c16_37] : memref<1x8x32xbf16, #tpu.memory_space<vmem>>, vector<1x8x16xbf16>
      %56 = vector.shape_cast %55 : vector<1x8x16xbf16> to vector<8x16xbf16>
      %c0_38 = arith.constant 0 : index
      %c0_39 = arith.constant 0 : index
      %c16_40 = arith.constant 16 : index
      %57 = vector.load %arg5[%c0_38, %c0_39, %c16_40] : memref<1x8x32xbf16, #tpu.memory_space<vmem>>, vector<1x8x16xbf16>
      %58 = vector.shape_cast %57 : vector<1x8x16xbf16> to vector<8x16xbf16>
      %cst_41 = arith.constant dense<0.000000e+00> : vector<8x8xf32>
      %59 = tpu.matmul %54, %56, %cst_41 {dimension_numbers = #tpu.dot_dimension_numbers<[1], [1], [0], [0], [0, 0, 1, 0], [], []>} : vector<8x16xbf16>, vector<8x16xbf16>, vector<8x8xf32> -> vector<8x8xf32>
      %cst_42 = arith.constant -1.000000e+30 : f32
      %60 = vector.broadcast %cst_42 : f32 to vector<8x8xf32>
      %61 = arith.select %11, %59, %60 : vector<8x8xi1>, vector<8x8xf32>
      %c1 = arith.constant 1 : index
      %c0_43 = arith.constant 0 : index
      %c0_44 = arith.constant 0 : index
      %62 = vector.load %arg9[%c1, %c0_43, %c0_44] : memref<2x8x1xf32, #tpu.memory_space<vmem>>, vector<1x8x1xf32>
      %63 = vector.shape_cast %62 : vector<1x8x1xf32> to vector<8x1xf32>
      %cst_45 = arith.constant dense<0xFF800000> : vector<8xf32>
      %64 = vector.multi_reduction <maximumf>, %61, %cst_45 [1] : vector<8x8xf32> to vector<8xf32>
      %65 = vector.shape_cast %64 : vector<8xf32> to vector<8x1xf32>
      %66 = arith.maximumf %63, %65 : vector<8x1xf32>
      %67 = arith.subf %63, %66 : vector<8x1xf32>
      %68 = math.exp %67 : vector<8x1xf32>
      %69 = vector.broadcast %66 : vector<8x1xf32> to vector<8x8xf32>
      %70 = arith.subf %61, %69 : vector<8x8xf32>
      %71 = math.exp %70 : vector<8x8xf32>
      %c1_46 = arith.constant 1 : index
      %c0_47 = arith.constant 0 : index
      %c0_48 = arith.constant 0 : index
      %72 = vector.load %arg10[%c1_46, %c0_47, %c0_48] : memref<2x8x1xf32, #tpu.memory_space<vmem>>, vector<1x8x1xf32>
      %73 = vector.shape_cast %72 : vector<1x8x1xf32> to vector<8x1xf32>
      %74 = arith.mulf %68, %73 : vector<8x1xf32>
      %cst_49 = arith.constant dense<0.000000e+00> : vector<8xf32>
      %75 = vector.multi_reduction <add>, %71, %cst_49 [1] : vector<8x8xf32> to vector<8xf32>
      %76 = vector.shape_cast %75 : vector<8xf32> to vector<8x1xf32>
      %77 = arith.addf %74, %76 : vector<8x1xf32>
      %c1_50 = arith.constant 1 : index
      %c0_51 = arith.constant 0 : index
      %c0_52 = arith.constant 0 : index
      %78 = vector.load %arg10[%c1_50, %c0_51, %c0_52] : memref<2x8x1xf32, #tpu.memory_space<vmem>>, vector<1x8x1xf32>
      %79 = vector.shape_cast %78 : vector<1x8x1xf32> to vector<8x1xf32>
      %80 = vector.shape_cast %77 : vector<8x1xf32> to vector<1x8x1xf32>
      tpu.vector_store %arg10[%c1_50, %c0_51, %c0_52], %80 {strides = array<i32>} : memref<2x8x1xf32, #tpu.memory_space<vmem>>, vector<1x8x1xf32>,
      %c1_53 = arith.constant 1 : index
      %c0_54 = arith.constant 0 : index
      %c0_55 = arith.constant 0 : index
      %81 = vector.load %arg11[%c1_53, %c0_54, %c0_55] : memref<2x8x16xf32, #tpu.memory_space<vmem>>, vector<1x8x16xf32>
      %82 = vector.shape_cast %81 : vector<1x8x16xf32> to vector<8x16xf32>
      %83 = vector.broadcast %68 : vector<8x1xf32> to vector<8x16xf32>
      %84 = arith.mulf %83, %82 : vector<8x16xf32>
      %85 = arith.truncf %71 : vector<8x8xf32> to vector<8x8xbf16>
      %cst_56 = arith.constant dense<0.000000e+00> : vector<8x16xf32>
      %86 = tpu.matmul %85, %58, %cst_56 {dimension_numbers = #tpu.dot_dimension_numbers<[1], [0], [0], [1], [0, 0, 1, 1], [], []>} : vector<8x8xbf16>, vector<8x16xbf16>, vector<8x16xf32> -> vector<8x16xf32>
      %87 = arith.addf %84, %86 : vector<8x16xf32>
      %c1_57 = arith.constant 1 : index
      %c0_58 = arith.constant 0 : index
      %c0_59 = arith.constant 0 : index
      %88 = vector.load %arg11[%c1_57, %c0_58, %c0_59] : memref<2x8x16xf32, #tpu.memory_space<vmem>>, vector<1x8x16xf32>
      %89 = vector.shape_cast %88 : vector<1x8x16xf32> to vector<8x16xf32>
      %90 = vector.shape_cast %87 : vector<8x16xf32> to vector<1x8x16xf32>
      tpu.vector_store %arg11[%c1_57, %c0_58, %c0_59], %90 {strides = array<i32>} : memref<2x8x16xf32, #tpu.memory_space<vmem>>, vector<1x8x16xf32>,
      %c1_60 = arith.constant 1 : index
      %c0_61 = arith.constant 0 : index
      %c0_62 = arith.constant 0 : index
      %91 = vector.load %arg9[%c1_60, %c0_61, %c0_62] : memref<2x8x1xf32, #tpu.memory_space<vmem>>, vector<1x8x1xf32>
      %92 = vector.shape_cast %91 : vector<1x8x1xf32> to vector<8x1xf32>
      %93 = vector.shape_cast %66 : vector<8x1xf32> to vector<1x8x1xf32>
      tpu.vector_store %arg9[%c1_60, %c0_61, %c0_62], %93 {strides = array<i32>} : memref<2x8x1xf32, #tpu.memory_space<vmem>>, vector<1x8x1xf32>,
      %cst_63 = arith.constant 0.000000e+00 : f32
      %94 = vector.broadcast %cst_63 : f32 to vector<8x32xf32>
      %c0_64 = arith.constant 0 : index
      %c0_65 = arith.constant 0 : index
      %c0_66 = arith.constant 0 : index
      %95 = vector.load %arg10[%c0_64, %c0_65, %c0_66] : memref<2x8x1xf32, #tpu.memory_space<vmem>>, vector<1x8x1xf32>
      %96 = vector.shape_cast %95 : vector<1x8x1xf32> to vector<8x1xf32>
      %cst_67 = arith.constant 1.000000e+00 : f32
      %97 = vector.broadcast %cst_67 : f32 to vector<8x1xf32>
      %98 = arith.divf %97, %96 : vector<8x1xf32>
      %c0_68 = arith.constant 0 : index
      %c0_69 = arith.constant 0 : index
      %c0_70 = arith.constant 0 : index
      %99 = vector.load %arg11[%c0_68, %c0_69, %c0_70] : memref<2x8x16xf32, #tpu.memory_space<vmem>>, vector<1x8x16xf32>
      %100 = vector.shape_cast %99 : vector<1x8x16xf32> to vector<8x16xf32>
      %101 = vector.broadcast %98 : vector<8x1xf32> to vector<8x16xf32>
      %102 = arith.mulf %100, %101 : vector<8x16xf32>
      %103 = arith.truncf %102 : vector<8x16xf32> to vector<8x16xbf16>
      %c0_71 = arith.constant 0 : index
      %c0_72 = arith.constant 0 : index
      %104 = vector.load %arg6[%c0_71, %c0_72] : memref<32x32xbf16, #tpu.memory_space<vmem>>, vector<16x32xbf16>
      %cst_73 = arith.constant dense<0.000000e+00> : vector<8x32xf32>
      %105 = tpu.matmul %103, %104, %cst_73 {dimension_numbers = #tpu.dot_dimension_numbers<[1], [0], [0], [1], [0, 0, 1, 1], [], []>} : vector<8x16xbf16>, vector<16x32xbf16>, vector<8x32xf32> -> vector<8x32xf32>
      %106 = arith.addf %94, %105 : vector<8x32xf32>
      %c1_74 = arith.constant 1 : index
      %c0_75 = arith.constant 0 : index
      %c0_76 = arith.constant 0 : index
      %107 = vector.load %arg10[%c1_74, %c0_75, %c0_76] : memref<2x8x1xf32, #tpu.memory_space<vmem>>, vector<1x8x1xf32>
      %108 = vector.shape_cast %107 : vector<1x8x1xf32> to vector<8x1xf32>
      %cst_77 = arith.constant 1.000000e+00 : f32
      %109 = vector.broadcast %cst_77 : f32 to vector<8x1xf32>
      %110 = arith.divf %109, %108 : vector<8x1xf32>
      %c1_78 = arith.constant 1 : index
      %c0_79 = arith.constant 0 : index
      %c0_80 = arith.constant 0 : index
      %111 = vector.load %arg11[%c1_78, %c0_79, %c0_80] : memref<2x8x16xf32, #tpu.memory_space<vmem>>, vector<1x8x16xf32>
      %112 = vector.shape_cast %111 : vector<1x8x16xf32> to vector<8x16xf32>
      %113 = vector.broadcast %110 : vector<8x1xf32> to vector<8x16xf32>
      %114 = arith.mulf %112, %113 : vector<8x16xf32>
      %115 = arith.truncf %114 : vector<8x16xf32> to vector<8x16xbf16>
      %c16_81 = arith.constant 16 : index
      %c0_82 = arith.constant 0 : index
      %116 = vector.load %arg6[%c16_81, %c0_82] : memref<32x32xbf16, #tpu.memory_space<vmem>>, vector<16x32xbf16>
      %cst_83 = arith.constant dense<0.000000e+00> : vector<8x32xf32>
      %117 = tpu.matmul %115, %116, %cst_83 {dimension_numbers = #tpu.dot_dimension_numbers<[1], [0], [0], [1], [0, 0, 1, 1], [], []>} : vector<8x16xbf16>, vector<16x32xbf16>, vector<8x32xf32> -> vector<8x32xf32>
      %118 = arith.addf %106, %117 : vector<8x32xf32>
      %c0_84 = arith.constant 0 : index
      %c0_85 = arith.constant 0 : index
      %119 = vector.load %arg7[%c0_84, %c0_85] : memref<1x32xf32, #tpu.memory_space<vmem>>, vector<1x32xf32>
      %120 = vector.broadcast %119 : vector<1x32xf32> to vector<8x32xf32>
      %121 = arith.addf %118, %120 : vector<8x32xf32>
      %c0_86 = arith.constant 0 : index
      %c0_87 = arith.constant 0 : index
      %c0_88 = arith.constant 0 : index
      %122 = vector.load %arg8[%c0_86, %c0_87, %c0_88] : memref<1x8x32xf32, #tpu.memory_space<vmem>>, vector<1x8x32xf32>
      %123 = vector.shape_cast %122 : vector<1x8x32xf32> to vector<8x32xf32>
      %124 = vector.shape_cast %121 : vector<8x32xf32> to vector<1x8x32xf32>
      tpu.vector_store %arg8[%c0_86, %c0_87, %c0_88], %124 {strides = array<i32>} : memref<1x8x32xf32, #tpu.memory_space<vmem>>, vector<1x8x32xf32>,
    } else {
    }
    return
  }
  func.func @transform_0(%arg0: i32, %arg1: i32, %arg2: i32) -> (i32, i32, i32) {
    %c0_i32 = arith.constant 0 : i32
    %c0_i32_0 = arith.constant 0 : i32
    return %arg0, %arg1, %c0_i32 : i32, i32, i32
  }
  func.func @transform_1(%arg0: i32, %arg1: i32, %arg2: i32) -> (i32, i32, i32) {
    %0 = arith.minsi %arg2, %arg1 : i32
    %c0_i32 = arith.constant 0 : i32
    %c0_i32_0 = arith.constant 0 : i32
    return %arg0, %0, %c0_i32 : i32, i32, i32
  }
  func.func @transform_2(%arg0: i32, %arg1: i32, %arg2: i32) -> (i32, i32, i32) {
    %0 = arith.minsi %arg2, %arg1 : i32
    %c0_i32 = arith.constant 0 : i32
    %c0_i32_0 = arith.constant 0 : i32
    return %arg0, %0, %c0_i32 : i32, i32, i32
  }
  func.func @transform_3(%arg0: i32, %arg1: i32, %arg2: i32) -> (i32, i32) {
    %c0_i32 = arith.constant 0 : i32
    %c0_i32_0 = arith.constant 0 : i32
    %c0_i32_1 = arith.constant 0 : i32
    return %c0_i32, %c0_i32_0 : i32, i32
  }
  func.func @transform_4(%arg0: i32, %arg1: i32, %arg2: i32) -> (i32, i32) {
    %c0_i32 = arith.constant 0 : i32
    %c0_i32_0 = arith.constant 0 : i32
    %c0_i32_1 = arith.constant 0 : i32
    return %c0_i32, %c0_i32_0 : i32, i32
  }
  func.func @transform_5(%arg0: i32, %arg1: i32, %arg2: i32) -> (i32, i32, i32) {
    %c0_i32 = arith.constant 0 : i32
    %c0_i32_0 = arith.constant 0 : i32
    return %arg0, %arg1, %c0_i32 : i32, i32, i32
  }
}

</mosaic_0001>

<llo_original>
// kernel: masked_causal_attention.2
$region0: #{masked_causal_attention.2}
  #allocation0 [shape = 'u32[]', space=smem, size = 0x4, offset = 0x4, fixed_abs, tag = 'smem constant byte address 0x4 - core index']
  #allocation1 [shape = 'u32[144,128]{1,0:T(1,128)}', space=vmem, size = 0x12000, scoped, tag = 'internal scratch']
  %s0 = inlined_call_operand.hbm [shape: f32[2,8,32], index: 0, kind: input, shape index: {}]
  %s1 = inlined_call_operand.hbm [shape: bf16[32,96], index: 1, kind: input, shape index: {}]
  %s2 = inlined_call_operand.vmem [shape: f32[1,96], index: 2, kind: input, shape index: {}]
  %s3 = inlined_call_operand.vmem [shape: bf16[2,8,32], index: 3, kind: output, shape index: {0}]
  %s4 = inlined_call_operand.vmem [shape: bf16[2,8,32], index: 4, kind: output, shape index: {1}]
  %s5 = inlined_call_operand.vmem [shape: bf16[2,8,32], index: 5, kind: output, shape index: {2}]
  %6 = xla_tuple %s3, %s4, %s5
  %s7 = sld [smem:[#allocation0]]
  $region69: #{masked_causal_attention.2} parent=0
    _
  %s9 = ssub.s32 1, %s7
  %s10 = scalar_select 0, %s9, %s7
  $region1: #{masked_causal_attention.2} parent=0
    #allocation2 [shape = 'u8[8192]{0}', space=vmem, size = 0x2000, scoped, tag = 'input window, operand 0']
    #allocation3 [shape = 's32[2]{0}', space=sflag, size = 0x8, scoped, tag = 'scoped memory for masked_causal_attention.2']
    #allocation4 [shape = 'u8[8192]{0}', space=vmem, size = 0x2000, scoped, tag = 'input window, operand 1, single buffered']
    #allocation5 [shape = 's32[1]{0}', space=sflag, size = 0x4, scoped, tag = 'scoped memory for masked_causal_attention.2']
    %11 = vsyncpa [#allocation3], 0
    %s12 = scalar_lea.sflag [#allocation3], 1
    %13 = vsyncpa %s12, 0
    %14 = vsyncpa [#allocation5], 0
    loop: start=0, step=1, limit=4
    $region2: #{masked_causal_attention.2} parent=1 // loop_pre_header
      _
    $region3: #{masked_causal_attention.2} parent=1 // loop_header
      %s16 = sphi 0, %s20
      %p17 = scmp.ge.s32.totalorder %s16, 4
      %s23 = sphi 0, %s35
      %s24 = sphi 0, %s31
      %s25 = sphi 0, %s23
      %s26 = sphi 0, %s24
      %s27 = sphi 0, %s25
      %s28 = sphi 0, %s26
      %s40 = sphi 0, %s42
      %s43 = sphi 0, %s40
      %s44 = sphi 0, %s43
      %s60 = sphi 0, %s44
      %s64 = sphi 0, %s64
      %s66 = sphi 0, %s64
      %s67 = sphi 0, %s66
      %s81 = sphi 0, %s67
      %s85 = sphi 0, %s85
      %s87 = sphi 0, %s85
      %s88 = sphi 0, %s87
      %s102 = sphi 0, %s88
      %s110 = sphi 0, %s112
      %s113 = sphi 0, %s110
      %s114 = sphi 0, %s113
      %s130 = sphi 0, %s114
      %s138 = sphi 0, %s140
      %s141 = sphi 0, %s138
      %s142 = sphi 0, %s141
      %s158 = sphi 0, %s142
      %s166 = sphi 0, %s168
      %s169 = sphi 0, %s166
      %s170 = sphi 0, %s169
      %s186 = sphi 0, %s170
    $region4: #{masked_causal_attention.2} parent=1 // loop_header_branch
      %19 = sbr.rel (%p17) target = $region8
    $region5: #{masked_causal_attention.2} parent=1 // loop_body
      %s21 = ssub.s32 %s16, 1
      %s22 = ssub.s32 %s16, 2
      %s29 = sadd.s32 1, %s24
      %p30 = scmp.ge.s32.totalorder %s29, 1
      %s31 = scalar_select %p30, 0, %s29
      %s32 = sadd.s32 1, %s23
      %s33 = scalar_select %p30, %s32, %s23
      %p34 = scmp.ge.s32.totalorder %s33, 2
      %s35 = scalar_select %p34, 0, %s33
      %s36 = ssub.s32 %s23, %s35
      %s37 = ssub.s32 %s24, %s31
      %s38 = sor.u32 %s36, %s37
      %p39 = scmp.eq.s32.totalorder %s38, 0
      %s41 = sadd.s32 %s40, 1
      %s42 = scalar_select %p39, %s40, %s41
      %p45 = pneg %p39
      %p46 = scmp.eq.s32.totalorder %s16, 1
      %p47 = por %p45, %p46
      %p48 = scmp.ne.s32.totalorder %s40, %s43
      %p49 = scmp.eq.s32.totalorder %s16, 0
      %p50 = por %p48, %p49
      %p51 = scmp.ne.s32.totalorder %s40, %s43
      %p52 = scmp.eq.s32.totalorder %s21, 1
      %p53 = por %p51, %p52
      %p54 = scmp.ne.s32.totalorder %s43, %s44
      %p55 = scmp.eq.s32.totalorder %s21, 0
      %p56 = por %p54, %p55
      %p57 = scmp.ne.s32.totalorder %s43, %s44
      %p58 = scmp.eq.s32.totalorder %s22, 1
      %p59 = por %p57, %p58
      %p61 = scmp.ne.s32.totalorder %s44, %s60
      %p62 = scmp.eq.s32.totalorder %s22, 0
      %p63 = por %p61, %p62
      %s65 = sadd.s32 %s64, 1
      %p68 = scmp.eq.s32.totalorder %s16, 1
      %p69 = scmp.ne.s32.totalorder %s64, %s66
      %p70 = scmp.eq.s32.totalorder %s16, 0
      %p71 = por %p69, %p70
      %p72 = scmp.ne.s32.totalorder %s64, %s66
      %p73 = scmp.eq.s32.totalorder %s21, 1
      %p74 = por %p72, %p73
      %p75 = scmp.ne.s32.totalorder %s66, %s67
      %p76 = scmp.eq.s32.totalorder %s21, 0
      %p77 = por %p75, %p76
      %p78 = scmp.ne.s32.totalorder %s66, %s67
      %p79 = scmp.eq.s32.totalorder %s22, 1
      %p80 = por %p78, %p79
      %p82 = scmp.ne.s32.totalorder %s67, %s81
      %p83 = scmp.eq.s32.totalorder %s22, 0
      %p84 = por %p82, %p83
      %s86 = sadd.s32 %s85, 1
      %p89 = scmp.eq.s32.totalorder %s16, 1
      %p90 = scmp.ne.s32.totalorder %s85, %s87
      %p91 = scmp.eq.s32.totalorder %s16, 0
      %p92 = por %p90, %p91
      %p93 = scmp.ne.s32.totalorder %s85, %s87
      %p94 = scmp.eq.s32.totalorder %s21, 1
      %p95 = por %p93, %p94
      %p96 = scmp.ne.s32.totalorder %s87, %s88
      %p97 = scmp.eq.s32.totalorder %s21, 0
      %p98 = por %p96, %p97
      %p99 = scmp.ne.s32.totalorder %s87, %s88
      %p100 = scmp.eq.s32.totalorder %s22, 1
      %p101 = por %p99, %p100
      %p103 = scmp.ne.s32.totalorder %s88, %s102
      %p104 = scmp.eq.s32.totalorder %s22, 0
      %p105 = por %p103, %p104
      %s106 = ssub.s32 %s23, %s35
      %s107 = ssub.s32 %s24, %s31
      %s108 = sor.u32 %s106, %s107
      %p109 = scmp.eq.s32.totalorder %s108, 0
      %s111 = sadd.s32 %s110, 1
      %s112 = scalar_select %p109, %s110, %s111
      %p115 = pneg %p109
      %p116 = scmp.eq.s32.totalorder %s16, 1
      %p117 = por %p115, %p116
      %p118 = scmp.ne.s32.totalorder %s110, %s113
      %p119 = scmp.eq.s32.totalorder %s16, 0
      %p120 = por %p118, %p119
      %p121 = scmp.ne.s32.totalorder %s110, %s113
      %p122 = scmp.eq.s32.totalorder %s21, 1
      %p123 = por %p121, %p122
      %p124 = scmp.ne.s32.totalorder %s113, %s114
      %p125 = scmp.eq.s32.totalorder %s21, 0
      %p126 = por %p124, %p125
      %p127 = scmp.ne.s32.totalorder %s113, %s114
      %p128 = scmp.eq.s32.totalorder %s22, 1
      %p129 = por %p127, %p128
      %p131 = scmp.ne.s32.totalorder %s114, %s130
      %p132 = scmp.eq.s32.totalorder %s22, 0
      %p133 = por %p131, %p132
      %s134 = ssub.s32 %s23, %s35
      %s135 = ssub.s32 %s24, %s31
      %s136 = sor.u32 %s134, %s135
      %p137 = scmp.eq.s32.totalorder %s136, 0
      %s139 = sadd.s32 %s138, 1
      %s140 = scalar_select %p137, %s138, %s139
      %p143 = pneg %p137
      %p144 = scmp.eq.s32.totalorder %s16, 1
      %p145 = por %p143, %p144
      %p146 = scmp.ne.s32.totalorder %s138, %s141
      %p147 = scmp.eq.s32.totalorder %s16, 0
      %p148 = por %p146, %p147
      %p149 = scmp.ne.s32.totalorder %s138, %s141
      %p150 = scmp.eq.s32.totalorder %s21, 1
      %p151 = por %p149, %p150
      %p152 = scmp.ne.s32.totalorder %s141, %s142
      %p153 = scmp.eq.s32.totalorder %s21, 0
      %p154 = por %p152, %p153
      %p155 = scmp.ne.s32.totalorder %s141, %s142
      %p156 = scmp.eq.s32.totalorder %s22, 1
      %p157 = por %p155, %p156
      %p159 = scmp.ne.s32.totalorder %s142, %s158
      %p160 = scmp.eq.s32.totalorder %s22, 0
      %p161 = por %p159, %p160
      %s162 = ssub.s32 %s23, %s35
      %s163 = ssub.s32 %s24, %s31
      %s164 = sor.u32 %s162, %s163
      %p165 = scmp.eq.s32.totalorder %s164, 0
      %s167 = sadd.s32 %s166, 1
      %s168 = scalar_select %p165, %s166, %s167
      %p171 = pneg %p165
      %p172 = scmp.eq.s32.totalorder %s16, 1
      %p173 = por %p171, %p172
      %p174 = scmp.ne.s32.totalorder %s166, %s169
      %p175 = scmp.eq.s32.totalorder %s16, 0
      %p176 = por %p174, %p175
      %p177 = scmp.ne.s32.totalorder %s166, %s169
      %p178 = scmp.eq.s32.totalorder %s21, 1
      %p179 = por %p177, %p178
      %p180 = scmp.ne.s32.totalorder %s169, %s170
      %p181 = scmp.eq.s32.totalorder %s21, 0
      %p182 = por %p180, %p181
      %p183 = scmp.ne.s32.totalorder %s169, %s170
      %p184 = scmp.eq.s32.totalorder %s22, 1
      %p185 = por %p183, %p184
      %p187 = scmp.ne.s32.totalorder %s170, %s186
      %p188 = scmp.eq.s32.totalorder %s22, 0
      %p189 = por %p187, %p188
      %p190 = scmp.le.s32.totalorder 1, %s16
      %p191 = scmp.lt.s32.totalorder %s16, 3
      %p192 = pnand %p190, %p191
      %p193 = pneg %p192
      // Predicated region
      $region9: #{masked_causal_attention.2} parent=5 // pred_check
        _
      $region10: #{masked_causal_attention.2} parent=5 // pred_check_branch
        %195 = sbr.rel (%p192) target = $region12
      $region11: #{masked_causal_attention.2} parent=5 // pred_region
        %s196 = ssub.s32 %s16, 1
        // Predicated region
        $region13: #{masked_causal_attention.2} parent=11 // pred_check
          %p197 = pneg %p77
        $region14: #{masked_causal_attention.2} parent=11 // pred_check_branch
          %199 = sbr.rel (%p197) target = $region16
        $region15: #{masked_causal_attention.2} parent=11 // pred_region
          %s201 = ssub.s32 256, 256
          %202 = vsyncadd [#allocation5], %s201
          %s203 = sshll.u32 [#allocation4], 4
          %s204 = int_to_ptr.vmem [resolvable:$true] %s203
          %209 = dma.hbm_to_vmem [thread:$0]  %s1, 256, %s204, [#allocation5], 64, 64, 4
        $region16: #{masked_causal_attention.2} parent=11 // pred_fallthru
          _
        // Predicated region
        $region17: #{masked_causal_attention.2} parent=11 // pred_check
          %p210 = pneg %p98
        $region18: #{masked_causal_attention.2} parent=11 // pred_check_branch
          %212 = sbr.rel (%p210) target = $region20
        $region19: #{masked_causal_attention.2} parent=11 // pred_region
          _
        $region20: #{masked_causal_attention.2} parent=11 // pred_fallthru
          _
      $region12: #{masked_causal_attention.2} parent=5 // pred_fallthru
        _
      %p213 = scmp.lt.s32.totalorder %s16, 2
      // Predicated region
      $region21: #{masked_causal_attention.2} parent=5 // pred_check
        %p214 = pneg %p213
      $region22: #{masked_causal_attention.2} parent=5 // pred_check_branch
        %216 = sbr.rel (%p214) target = $region24
      $region23: #{masked_causal_attention.2} parent=5 // pred_region
        // Predicated region
        $region25: #{masked_causal_attention.2} parent=23 // pred_check
          %p217 = pneg %p50
        $region26: #{masked_causal_attention.2} parent=23 // pred_check_branch
          %219 = sbr.rel (%p217) target = $region28
        $region27: #{masked_causal_attention.2} parent=23 // pred_region
          %s220 = sand.u32 %s40, 1
          %s221 = scalar_lea.sflag [#allocation3], %s220
          %s222 = sand.u32 %s40, 1
          %s223 = smul.addr %s222, 8
          %s224 = scalar_lea.vmem [#allocation2], %s223
          %s226 = ssub.s32 128, 128
          %227 = vsyncadd %s221, %s226
          %s228 = sadd.s32 %s24, %s23
          %s229 = smul.addr %s228, 128
          %s230 = scalar_lea.hbm %s0, %s229
          %s232 = sshll.u32 %s224, 4
          %s233 = int_to_ptr.vmem [resolvable:$true] %s232
          %235 = dma.hbm_to_vmem [thread:$0]  %s230, 128, %s233, %s221
        $region28: #{masked_causal_attention.2} parent=23 // pred_fallthru
          _
      $region24: #{masked_causal_attention.2} parent=5 // pred_fallthru
        _
      %p236 = scmp.le.s32.totalorder 1, %s16
      %p237 = scmp.lt.s32.totalorder %s16, 3
      %p238 = pnand %p236, %p237
      %p239 = pneg %p238
      // Predicated region
      $region29: #{masked_causal_attention.2} parent=5 // pred_check
        _
      $region30: #{masked_causal_attention.2} parent=5 // pred_check_branch
        %241 = sbr.rel (%p238) target = $region32
      $region31: #{masked_causal_attention.2} parent=5 // pred_region
        %s242 = ssub.s32 %s16, 1
        %s243 = sand.u32 %s43, 1
        %s244 = scalar_lea.sflag [#allocation3], %s243
        %s245 = sand.u32 %s43, 1
        %s246 = smul.addr %s245, 8
        %s247 = scalar_lea.vmem [#allocation2], %s246
        // Predicated region
        $region33: #{masked_causal_attention.2} parent=31 // pred_check
          %p248 = pneg %p56
        $region34: #{masked_causal_attention.2} parent=31 // pred_check_branch
          %250 = sbr.rel (%p248) target = $region36
        $region35: #{masked_causal_attention.2} parent=31 // pred_region
          %251 = dma.done %s244, 128
        $region36: #{masked_causal_attention.2} parent=31 // pred_fallthru
          _
        // Predicated region
        $region37: #{masked_causal_attention.2} parent=31 // pred_check
          %p252 = pneg %p77
        $region38: #{masked_causal_attention.2} parent=31 // pred_check_branch
          %254 = sbr.rel (%p252) target = $region40
        $region39: #{masked_causal_attention.2} parent=31 // pred_region
          %255 = dma.done [#allocation5], 256
        $region40: #{masked_causal_attention.2} parent=31 // pred_fallthru
          _
        %s256 = sand.u32 %s43, 1
        %s257 = scalar_lea.sflag [#allocation3], %s256
        %s258 = sand.u32 %s43, 1
        %s259 = smul.addr %s258, 8
        %s260 = scalar_lea.vmem [#allocation2], %s259
        %p261 = pneg %p56
        %p262 = pneg %p53
        %p263 = pneg %p77
        %p264 = pneg %p74
        %p265 = pneg %p98
        %p266 = pneg %p95
        %p267 = pneg %p126
        %p268 = pneg %p123
        %p269 = scmp.lt.s32.totalorder %s25, 1
        %s270 = scalar_select %p269, %s25, 1
        %p271 = scmp.lt.s32.totalorder %s26, 0
        %s272 = scalar_select %p271, %s26, 0
        %s273 = sadd.s32 %s272, %s270
        %s274 = smul.addr %s273, 4
        %s275 = scalar_lea.vmem %s3, %s274
        %p276 = pneg %p154
        %p277 = pneg %p151
        %p278 = scmp.lt.s32.totalorder %s25, 1
        %s279 = scalar_select %p278, %s25, 1
        %p280 = scmp.lt.s32.totalorder %s26, 0
        %s281 = scalar_select %p280, %s26, 0
        %s282 = sadd.s32 %s281, %s279
        %s283 = smul.addr %s282, 4
        %s284 = scalar_lea.vmem %s4, %s283
        %p285 = pneg %p182
        %p286 = pneg %p179
        %p287 = scmp.lt.s32.totalorder %s25, 1
        %s288 = scalar_select %p287, %s25, 1
        %p289 = scmp.lt.s32.totalorder %s26, 0
        %s290 = scalar_select %p289, %s26, 0
        %s291 = sadd.s32 %s290, %s288
        %s292 = smul.addr %s291, 4
        %s293 = scalar_lea.vmem %s5, %s292
        %p294 = scmp.lt.s32.totalorder %s25, 1
        %s295 = scalar_select %p294, %s25, 1
        %p296 = scmp.lt.s32.totalorder %s26, 0
        %s297 = scalar_select %p296, %s26, 0
        %s298 = sadd.s32 %s297, %s295
        %s299 = smul.addr %s298, 4
        %s300 = scalar_lea.vmem %s3, %s299
        %p301 = scmp.lt.s32.totalorder %s25, 1
        %s302 = scalar_select %p301, %s25, 1
        %p303 = scmp.lt.s32.totalorder %s26, 0
        %s304 = scalar_select %p303, %s26, 0
        %s305 = sadd.s32 %s304, %s302
        %s306 = smul.addr %s305, 4
        %s307 = scalar_lea.vmem %s4, %s306
        %p308 = scmp.lt.s32.totalorder %s25, 1
        %s309 = scalar_select %p308, %s25, 1
        %p310 = scmp.lt.s32.totalorder %s26, 0
        %s311 = scalar_select %p310, %s26, 0
        %s312 = sadd.s32 %s311, %s309
        %s313 = smul.addr %s312, 4
        %s314 = scalar_lea.vmem %s5, %s313
        %v316 = vld [vmem:[%s247] sm:$0xff]
        %v317 = vpack.c.bf16 %v316, %v316
        %v318 = vld [vmem:[#allocation4] sm:$0xf]
        %v319 = vld [vmem:[#allocation4 + $0x4] sm:$0xf]
        %v320 = vld [vmem:[#allocation4 + $0x8] sm:$0xf]
        %v321 = vld [vmem:[#allocation4 + $0xc] sm:$0xf]
        %v322 = vld [vmem:[%s2] sm:$0x1]
        %v324 = vlaneseq
        %v325 = vshrl.u32 %v324, 7
        %v326 = vsub.s32 0, %v325
        %v327 = vrot.slane %v322, %v326
        %v333 = vunpack.c.l.b16 %v318
        %v334 = vunpack.c.l.b16 %v319
        %v335 = vunpack.c.l.b16 %v320
        %v336 = vunpack.c.l.b16 %v321
        %v337 = vpack.c.b16 %v334, %v333
        %v338 = vpack.c.b16 %v336, %v335
        %vm341 = vcmask 261120
        %v343 = vsel %vm341, %v317, 0
        %345 = vmatprep.subr.bf16.mxu0 0
        %346 = vmatpush1.bf16.msra.mxu0 %v337
        %347 = vmatprep.subr.bf16.mxu0 0
        %348 = vmatpush1.bf16.msra.mxu0 %v338
        %349 = vmatprep.subr.bf16.mxu0 0
        %350 = vmatpush1.bf16.msra.mxu0 0
        %351 = vmatprep.subr.bf16.mxu0 0
        %352 = vmatpush1.bf16.msra.mxu0 0
        %353 = vmatprep.subr.bf16.mxu0 0
        %354 = vmatpush1.bf16.msra.mxu0 0
        %355 = vmatprep.subr.bf16.mxu0 0
        %356 = vmatpush1.bf16.msra.mxu0 0
        %357 = vmatprep.subr.bf16.mxu0 0
        %358 = vmatpush1.bf16.msra.mxu0 0
        %359 = vmatprep.subr.bf16.mxu0 0
        %360 = vmatpush1.bf16.msra.mxu0 0
        %361 = vmatprep.subr.bf16.mxu0 0
        %362 = vmatpush1.bf16.msra.mxu0 0
        %363 = vmatprep.subr.bf16.mxu0 0
        %364 = vmatpush1.bf16.msra.mxu0 0
        %365 = vmatprep.subr.bf16.mxu0 0
        %366 = vmatpush1.bf16.msra.mxu0 0
        %367 = vmatprep.subr.bf16.mxu0 0
        %368 = vmatpush1.bf16.msra.mxu0 0
        %369 = vmatprep.subr.bf16.mxu0 0
        %370 = vmatpush1.bf16.msra.mxu0 0
        %371 = vmatprep.subr.bf16.mxu0 0
        %372 = vmatpush1.bf16.msra.mxu0 0
        %373 = vmatprep.subr.bf16.mxu0 0
        %374 = vmatpush1.bf16.msra.mxu0 0
        %375 = vmatprep.subr.bf16.mxu0 0
        %376 = vmatpush1.bf16.msra.mxu0 0
        %377 = vmatprep.mubr.bf16.mxu0 0
        %378 = vmatmul.mubr.bf16.gmra.mrb[0].mxu0 %v343
        %v379 = vpop.f32.mrb[0].mxu0
        %v380 = vadd.f32 %v327, %v379
        %v381 = vpop.f32.mrb[0].mxu0
        %v382 = vpop.f32.mrb[0].mxu0
        %v383 = vpop.f32.mrb[0].mxu0
        %384 = vdwg.mxu0
        %v385 = vpack.c.bf16 %v380, %v380
        %vm386 = vcmask 257024
        %387 = vst.msk [vmem:[%s300] sm:$0xf] %vm386, %v385
        %v389 = vunpack.c.l.b16 %v385
        %v390 = vpack.c.b16 %v389, %v389
        %391 = vrot.lane.b32.xlu0 %v390, 96
        %v392 = vpop.permute.xlu0 %391
        %394 = vst.msk [vmem:[%s307] sm:$0xf] %vm386, %v392
        %395 = vrot.lane.b32.xlu0 %v390, 64
        %v396 = vpop.permute.xlu0 %395
        %398 = vst.msk [vmem:[%s314] sm:$0xf] %vm386, %v396
        %p399 = scmp.lt.s32.totalorder %s25, 1
        %s400 = scalar_select %p399, %s25, 1
        %p401 = scmp.lt.s32.totalorder %s26, 0
        %s402 = scalar_select %p401, %s26, 0
        %s403 = sadd.s32 %s402, %s400
        %s404 = smul.addr %s403, 4
        %s405 = scalar_lea.vmem %s3, %s404
        %p406 = scmp.lt.s32.totalorder %s25, 1
        %s407 = scalar_select %p406, %s25, 1
        %p408 = scmp.lt.s32.totalorder %s26, 0
        %s409 = scalar_select %p408, %s26, 0
        %s410 = sadd.s32 %s409, %s407
        %s411 = smul.addr %s410, 4
        %s412 = scalar_lea.vmem %s4, %s411
        %p413 = scmp.lt.s32.totalorder %s25, 1
        %s414 = scalar_select %p413, %s25, 1
        %p415 = scmp.lt.s32.totalorder %s26, 0
        %s416 = scalar_select %p415, %s26, 0
        %s417 = sadd.s32 %s416, %s414
        %s418 = smul.addr %s417, 4
        %s419 = scalar_lea.vmem %s5, %s418
        // Predicated region
        $region41: #{masked_causal_attention.2} parent=31 // pred_check
          %p420 = pneg %p123
        $region42: #{masked_causal_attention.2} parent=31 // pred_check_branch
          %422 = sbr.rel (%p420) target = $region44
        $region43: #{masked_causal_attention.2} parent=31 // pred_region
          _
        $region44: #{masked_causal_attention.2} parent=31 // pred_fallthru
          _
        // Predicated region
        $region45: #{masked_causal_attention.2} parent=31 // pred_check
          %p423 = pneg %p151
        $region46: #{masked_causal_attention.2} parent=31 // pred_check_branch
          %425 = sbr.rel (%p423) target = $region48
        $region47: #{masked_causal_attention.2} parent=31 // pred_region
          _
        $region48: #{masked_causal_attention.2} parent=31 // pred_fallthru
          _
        // Predicated region
        $region49: #{masked_causal_attention.2} parent=31 // pred_check
          %p426 = pneg %p179
        $region50: #{masked_causal_attention.2} parent=31 // pred_check_branch
          %428 = sbr.rel (%p426) target = $region52
        $region51: #{masked_causal_attention.2} parent=31 // pred_region
          _
        $region52: #{masked_causal_attention.2} parent=31 // pred_fallthru
          _
      $region32: #{masked_causal_attention.2} parent=5 // pred_fallthru
        _
      %p429 = scmp.le.s32.totalorder 2, %s16
      // Predicated region
      $region53: #{masked_causal_attention.2} parent=5 // pred_check
        %p430 = pneg %p429
      $region54: #{masked_causal_attention.2} parent=5 // pred_check_branch
        %432 = sbr.rel (%p430) target = $region56
      $region55: #{masked_causal_attention.2} parent=5 // pred_region
        %s433 = ssub.s32 %s16, 2
        // Predicated region
        $region57: #{masked_causal_attention.2} parent=55 // pred_check
          %p434 = pneg %p129
        $region58: #{masked_causal_attention.2} parent=55 // pred_check_branch
          %436 = sbr.rel (%p434) target = $region60
        $region59: #{masked_causal_attention.2} parent=55 // pred_region
          %p437 = scmp.lt.s32.totalorder %s27, 1
          %s438 = scalar_select %p437, %s27, 1
          %p439 = scmp.lt.s32.totalorder %s28, 0
          %s440 = scalar_select %p439, %s28, 0
          %s441 = sadd.s32 %s440, %s438
          %s442 = smul.addr %s441, 4
          %s443 = scalar_lea.vmem %s3, %s442
        $region60: #{masked_causal_attention.2} parent=55 // pred_fallthru
          _
        // Predicated region
        $region61: #{masked_causal_attention.2} parent=55 // pred_check
          %p444 = pneg %p157
        $region62: #{masked_causal_attention.2} parent=55 // pred_check_branch
          %446 = sbr.rel (%p444) target = $region64
        $region63: #{masked_causal_attention.2} parent=55 // pred_region
          %p447 = scmp.lt.s32.totalorder %s27, 1
          %s448 = scalar_select %p447, %s27, 1
          %p449 = scmp.lt.s32.totalorder %s28, 0
          %s450 = scalar_select %p449, %s28, 0
          %s451 = sadd.s32 %s450, %s448
          %s452 = smul.addr %s451, 4
          %s453 = scalar_lea.vmem %s4, %s452
        $region64: #{masked_causal_attention.2} parent=55 // pred_fallthru
          _
        // Predicated region
        $region65: #{masked_causal_attention.2} parent=55 // pred_check
          %p454 = pneg %p185
        $region66: #{masked_causal_attention.2} parent=55 // pred_check_branch
          %456 = sbr.rel (%p454) target = $region68
        $region67: #{masked_causal_attention.2} parent=55 // pred_region
          %p457 = scmp.lt.s32.totalorder %s27, 1
          %s458 = scalar_select %p457, %s27, 1
          %p459 = scmp.lt.s32.totalorder %s28, 0
          %s460 = scalar_select %p459, %s28, 0
          %s461 = sadd.s32 %s460, %s458
          %s462 = smul.addr %s461, 4
          %s463 = scalar_lea.vmem %s5, %s462
        $region68: #{masked_causal_attention.2} parent=55 // pred_fallthru
          _
      $region56: #{masked_causal_attention.2} parent=5 // pred_fallthru
        _
    $region6: #{masked_causal_attention.2} parent=1 // loop_footer
      %s20 = sadd.s32 1, %s16
    $region7: #{masked_causal_attention.2} parent=1 // loop_footer_branch
      %15 = sbr.rel target = $region3
    $region8: #{masked_causal_attention.2} parent=1 // loop_exit
      _
    %464 = vsyncpa [#allocation3], 1
    %s465 = scalar_lea.sflag [#allocation3], 1
    %466 = vsyncpa %s465, 1
    %467 = vsyncpa [#allocation5], 1

// kernel: masked_causal_attention.3
$region0: #{masked_causal_attention.3}
  #allocation0 [shape = 'u32[]', space=smem, size = 0x4, offset = 0x4, fixed_abs, tag = 'smem constant byte address 0x4 - core index']
  #allocation1 [shape = 'u32[144,128]{1,0:T(1,128)}', space=vmem, size = 0x12000, scoped, tag = 'internal scratch']
  #allocation2 [shape = 'f32[2,8,1]{2,1,0:T(8,128)}', space=vmem, size = 0x2000, scoped, tag = 'scratch operand']
  #allocation3 [shape = 'f32[2,8,1]{2,1,0:T(8,128)}', space=vmem, size = 0x2000, scoped, tag = 'scratch operand']
  #allocation4 [shape = 'f32[2,8,16]{2,1,0:T(8,128)}', space=vmem, size = 0x2000, scoped, tag = 'scratch operand']
  %s0 = inlined_call_operand.vmem [shape: bf16[2,8,32], index: 0, kind: input, shape index: {}]
  %s1 = inlined_call_operand.vmem [shape: bf16[2,8,32], index: 1, kind: input, shape index: {}]
  %s2 = inlined_call_operand.vmem [shape: bf16[2,8,32], index: 2, kind: input, shape index: {}]
  %s3 = inlined_call_operand.vmem [shape: bf16[32,32], index: 3, kind: input, shape index: {}]
  %s4 = inlined_call_operand.vmem [shape: f32[1,32], index: 4, kind: input, shape index: {}]
  %s5 = inlined_call_operand.hbm [shape: f32[2,8,32], index: 5, kind: output, shape index: {}]
  %s6 = sld [smem:[#allocation0]]
  $region65: #{masked_causal_attention.3} parent=0
    _
  %s8 = ssub.s32 1, %s6
  %s9 = scalar_select 0, %s8, %s6
  $region1: #{masked_causal_attention.3} parent=0
    #allocation5 [shape = 'u8[8192]{0}', space=vmem, size = 0x2000, scoped, tag = 'output window, operand 0']
    #allocation6 [shape = 's32[2]{0}', space=sflag, size = 0x8, scoped, tag = 'scoped memory for masked_causal_attention.3']
    %10 = vsyncpa [#allocation6], 0
    %s11 = scalar_lea.sflag [#allocation6], 1
    %12 = vsyncpa %s11, 0
    loop: start=0, step=1, limit=4
    $region2: #{masked_causal_attention.3} parent=1 // loop_pre_header
      _
    $region3: #{masked_causal_attention.3} parent=1 // loop_header
      %s14 = sphi 0, %s18
      %p15 = scmp.ge.s32.totalorder %s14, 4
      %s21 = sphi 0, %s40
      %s22 = sphi 0, %s36
      %s23 = sphi 0, %s32
      %s24 = sphi 0, %s21
      %s25 = sphi 0, %s22
      %s26 = sphi 0, %s23
      %s27 = sphi 0, %s24
      %s28 = sphi 0, %s25
      %s29 = sphi 0, %s26
      %s45 = sphi 0, %s47
      %s48 = sphi 0, %s45
      %s49 = sphi 0, %s48
      %s65 = sphi 0, %s49
      %s77 = sphi 0, %s79
      %s80 = sphi 0, %s77
      %s81 = sphi 0, %s80
      %s97 = sphi 0, %s81
      %s109 = sphi 0, %s111
      %s112 = sphi 0, %s109
      %s113 = sphi 0, %s112
      %s129 = sphi 0, %s113
      %s133 = sphi 0, %s133
      %s135 = sphi 0, %s133
      %s136 = sphi 0, %s135
      %s150 = sphi 0, %s136
      %s154 = sphi 0, %s154
      %s156 = sphi 0, %s154
      %s157 = sphi 0, %s156
      %s171 = sphi 0, %s157
      %s179 = sphi 0, %s181
      %s182 = sphi 0, %s179
      %s183 = sphi 0, %s182
      %s199 = sphi 0, %s183
    $region4: #{masked_causal_attention.3} parent=1 // loop_header_branch
      %17 = sbr.rel (%p15) target = $region8
    $region5: #{masked_causal_attention.3} parent=1 // loop_body
      %s19 = ssub.s32 %s14, 1
      %s20 = ssub.s32 %s14, 2
      %s30 = sadd.s32 1, %s23
      %p31 = scmp.ge.s32.totalorder %s30, 1
      %s32 = scalar_select %p31, 0, %s30
      %s33 = sadd.s32 1, %s22
      %s34 = scalar_select %p31, %s33, %s22
      %p35 = scmp.ge.s32.totalorder %s34, 1
      %s36 = scalar_select %p35, 0, %s34
      %s37 = sadd.s32 1, %s21
      %s38 = scalar_select %p35, %s37, %s21
      %p39 = scmp.ge.s32.totalorder %s38, 2
      %s40 = scalar_select %p39, 0, %s38
      %s41 = ssub.s32 %s21, %s40
      %s42 = ssub.s32 %s22, %s36
      %s43 = sor.u32 %s41, %s42
      %p44 = scmp.eq.s32.totalorder %s43, 0
      %s46 = sadd.s32 %s45, 1
      %s47 = scalar_select %p44, %s45, %s46
      %p50 = pneg %p44
      %p51 = scmp.eq.s32.totalorder %s14, 1
      %p52 = por %p50, %p51
      %p53 = scmp.ne.s32.totalorder %s45, %s48
      %p54 = scmp.eq.s32.totalorder %s14, 0
      %p55 = por %p53, %p54
      %p56 = scmp.ne.s32.totalorder %s45, %s48
      %p57 = scmp.eq.s32.totalorder %s19, 1
      %p58 = por %p56, %p57
      %p59 = scmp.ne.s32.totalorder %s48, %s49
      %p60 = scmp.eq.s32.totalorder %s19, 0
      %p61 = por %p59, %p60
      %p62 = scmp.ne.s32.totalorder %s48, %s49
      %p63 = scmp.eq.s32.totalorder %s20, 1
      %p64 = por %p62, %p63
      %p66 = scmp.ne.s32.totalorder %s49, %s65
      %p67 = scmp.eq.s32.totalorder %s20, 0
      %p68 = por %p66, %p67
      %p69 = scmp.lt.s32.totalorder %s23, %s22
      %s70 = scalar_select %p69, %s23, %s22
      %p71 = scmp.lt.s32.totalorder %s32, %s36
      %s72 = scalar_select %p71, %s32, %s36
      %s73 = ssub.s32 %s21, %s40
      %s74 = ssub.s32 %s70, %s72
      %s75 = sor.u32 %s73, %s74
      %p76 = scmp.eq.s32.totalorder %s75, 0
      %s78 = sadd.s32 %s77, 1
      %s79 = scalar_select %p76, %s77, %s78
      %p82 = pneg %p76
      %p83 = scmp.eq.s32.totalorder %s14, 1
      %p84 = por %p82, %p83
      %p85 = scmp.ne.s32.totalorder %s77, %s80
      %p86 = scmp.eq.s32.totalorder %s14, 0
      %p87 = por %p85, %p86
      %p88 = scmp.ne.s32.totalorder %s77, %s80
      %p89 = scmp.eq.s32.totalorder %s19, 1
      %p90 = por %p88, %p89
      %p91 = scmp.ne.s32.totalorder %s80, %s81
      %p92 = scmp.eq.s32.totalorder %s19, 0
      %p93 = por %p91, %p92
      %p94 = scmp.ne.s32.totalorder %s80, %s81
      %p95 = scmp.eq.s32.totalorder %s20, 1
      %p96 = por %p94, %p95
      %p98 = scmp.ne.s32.totalorder %s81, %s97
      %p99 = scmp.eq.s32.totalorder %s20, 0
      %p100 = por %p98, %p99
      %p101 = scmp.lt.s32.totalorder %s23, %s22
      %s102 = scalar_select %p101, %s23, %s22
      %p103 = scmp.lt.s32.totalorder %s32, %s36
      %s104 = scalar_select %p103, %s32, %s36
      %s105 = ssub.s32 %s21, %s40
      %s106 = ssub.s32 %s102, %s104
      %s107 = sor.u32 %s105, %s106
      %p108 = scmp.eq.s32.totalorder %s107, 0
      %s110 = sadd.s32 %s109, 1
      %s111 = scalar_select %p108, %s109, %s110
      %p114 = pneg %p108
      %p115 = scmp.eq.s32.totalorder %s14, 1
      %p116 = por %p114, %p115
      %p117 = scmp.ne.s32.totalorder %s109, %s112
      %p118 = scmp.eq.s32.totalorder %s14, 0
      %p119 = por %p117, %p118
      %p120 = scmp.ne.s32.totalorder %s109, %s112
      %p121 = scmp.eq.s32.totalorder %s19, 1
      %p122 = por %p120, %p121
      %p123 = scmp.ne.s32.totalorder %s112, %s113
      %p124 = scmp.eq.s32.totalorder %s19, 0
      %p125 = por %p123, %p124
      %p126 = scmp.ne.s32.totalorder %s112, %s113
      %p127 = scmp.eq.s32.totalorder %s20, 1
      %p128 = por %p126, %p127
      %p130 = scmp.ne.s32.totalorder %s113, %s129
      %p131 = scmp.eq.s32.totalorder %s20, 0
      %p132 = por %p130, %p131
      %s134 = sadd.s32 %s133, 1
      %p137 = scmp.eq.s32.totalorder %s14, 1
      %p138 = scmp.ne.s32.totalorder %s133, %s135
      %p139 = scmp.eq.s32.totalorder %s14, 0
      %p140 = por %p138, %p139
      %p141 = scmp.ne.s32.totalorder %s133, %s135
      %p142 = scmp.eq.s32.totalorder %s19, 1
      %p143 = por %p141, %p142
      %p144 = scmp.ne.s32.totalorder %s135, %s136
      %p145 = scmp.eq.s32.totalorder %s19, 0
      %p146 = por %p144, %p145
      %p147 = scmp.ne.s32.totalorder %s135, %s136
      %p148 = scmp.eq.s32.totalorder %s20, 1
      %p149 = por %p147, %p148
      %p151 = scmp.ne.s32.totalorder %s136, %s150
      %p152 = scmp.eq.s32.totalorder %s20, 0
      %p153 = por %p151, %p152
      %s155 = sadd.s32 %s154, 1
      %p158 = scmp.eq.s32.totalorder %s14, 1
      %p159 = scmp.ne.s32.totalorder %s154, %s156
      %p160 = scmp.eq.s32.totalorder %s14, 0
      %p161 = por %p159, %p160
      %p162 = scmp.ne.s32.totalorder %s154, %s156
      %p163 = scmp.eq.s32.totalorder %s19, 1
      %p164 = por %p162, %p163
      %p165 = scmp.ne.s32.totalorder %s156, %s157
      %p166 = scmp.eq.s32.totalorder %s19, 0
      %p167 = por %p165, %p166
      %p168 = scmp.ne.s32.totalorder %s156, %s157
      %p169 = scmp.eq.s32.totalorder %s20, 1
      %p170 = por %p168, %p169
      %p172 = scmp.ne.s32.totalorder %s157, %s171
      %p173 = scmp.eq.s32.totalorder %s20, 0
      %p174 = por %p172, %p173
      %s175 = ssub.s32 %s21, %s40
      %s176 = ssub.s32 %s22, %s36
      %s177 = sor.u32 %s175, %s176
      %p178 = scmp.eq.s32.totalorder %s177, 0
      %s180 = sadd.s32 %s179, 1
      %s181 = scalar_select %p178, %s179, %s180
      %p184 = pneg %p178
      %p185 = scmp.eq.s32.totalorder %s14, 1
      %p186 = por %p184, %p185
      %p187 = scmp.ne.s32.totalorder %s179, %s182
      %p188 = scmp.eq.s32.totalorder %s14, 0
      %p189 = por %p187, %p188
      %p190 = scmp.ne.s32.totalorder %s179, %s182
      %p191 = scmp.eq.s32.totalorder %s19, 1
      %p192 = por %p190, %p191
      %p193 = scmp.ne.s32.totalorder %s182, %s183
      %p194 = scmp.eq.s32.totalorder %s19, 0
      %p195 = por %p193, %p194
      %p196 = scmp.ne.s32.totalorder %s182, %s183
      %p197 = scmp.eq.s32.totalorder %s20, 1
      %p198 = por %p196, %p197
      %p200 = scmp.ne.s32.totalorder %s183, %s199
      %p201 = scmp.eq.s32.totalorder %s20, 0
      %p202 = por %p200, %p201
      %p203 = scmp.le.s32.totalorder 1, %s14
      %p204 = scmp.lt.s32.totalorder %s14, 3
      %p205 = pnand %p203, %p204
      %p206 = pneg %p205
      // Predicated region
      $region9: #{masked_causal_attention.3} parent=5 // pred_check
        _
      $region10: #{masked_causal_attention.3} parent=5 // pred_check_branch
        %208 = sbr.rel (%p205) target = $region12
      $region11: #{masked_causal_attention.3} parent=5 // pred_region
        %s209 = ssub.s32 %s14, 1
        // Predicated region
        $region13: #{masked_causal_attention.3} parent=11 // pred_check
          %p210 = pneg %p146
        $region14: #{masked_causal_attention.3} parent=11 // pred_check_branch
          %212 = sbr.rel (%p210) target = $region16
        $region15: #{masked_causal_attention.3} parent=11 // pred_region
          _
        $region16: #{masked_causal_attention.3} parent=11 // pred_fallthru
          _
        // Predicated region
        $region17: #{masked_causal_attention.3} parent=11 // pred_check
          %p213 = pneg %p167
        $region18: #{masked_causal_attention.3} parent=11 // pred_check_branch
          %215 = sbr.rel (%p213) target = $region20
        $region19: #{masked_causal_attention.3} parent=11 // pred_region
          _
        $region20: #{masked_causal_attention.3} parent=11 // pred_fallthru
          _
      $region12: #{masked_causal_attention.3} parent=5 // pred_fallthru
        _
      %p216 = scmp.lt.s32.totalorder %s14, 2
      // Predicated region
      $region21: #{masked_causal_attention.3} parent=5 // pred_check
        %p217 = pneg %p216
      $region22: #{masked_causal_attention.3} parent=5 // pred_check_branch
        %219 = sbr.rel (%p217) target = $region24
      $region23: #{masked_causal_attention.3} parent=5 // pred_region
        // Predicated region
        $region25: #{masked_causal_attention.3} parent=23 // pred_check
          %p220 = pneg %p55
        $region26: #{masked_causal_attention.3} parent=23 // pred_check_branch
          %222 = sbr.rel (%p220) target = $region28
        $region27: #{masked_causal_attention.3} parent=23 // pred_region
          %p223 = scmp.lt.s32.totalorder %s21, 1
          %s224 = scalar_select %p223, %s21, 1
          %p225 = scmp.lt.s32.totalorder %s22, 0
          %s226 = scalar_select %p225, %s22, 0
          %s227 = sadd.s32 %s226, %s224
          %s228 = smul.addr %s227, 4
          %s229 = scalar_lea.vmem %s0, %s228
        $region28: #{masked_causal_attention.3} parent=23 // pred_fallthru
          _
        // Predicated region
        $region29: #{masked_causal_attention.3} parent=23 // pred_check
          %p230 = pneg %p87
        $region30: #{masked_causal_attention.3} parent=23 // pred_check_branch
          %232 = sbr.rel (%p230) target = $region32
        $region31: #{masked_causal_attention.3} parent=23 // pred_region
          %p233 = scmp.lt.s32.totalorder %s23, %s22
          %s234 = scalar_select %p233, %s23, %s22
          %p235 = scmp.lt.s32.totalorder %s21, 1
          %s236 = scalar_select %p235, %s21, 1
          %p237 = scmp.lt.s32.totalorder %s234, 0
          %s238 = scalar_select %p237, %s234, 0
          %s239 = sadd.s32 %s238, %s236
          %s240 = smul.addr %s239, 4
          %s241 = scalar_lea.vmem %s1, %s240
          %p242 = scmp.lt.s32.totalorder %s23, %s22
          %s243 = scalar_select %p242, %s23, %s22
        $region32: #{masked_causal_attention.3} parent=23 // pred_fallthru
          _
        // Predicated region
        $region33: #{masked_causal_attention.3} parent=23 // pred_check
          %p244 = pneg %p119
        $region34: #{masked_causal_attention.3} parent=23 // pred_check_branch
          %246 = sbr.rel (%p244) target = $region36
        $region35: #{masked_causal_attention.3} parent=23 // pred_region
          %p247 = scmp.lt.s32.totalorder %s23, %s22
          %s248 = scalar_select %p247, %s23, %s22
          %p249 = scmp.lt.s32.totalorder %s21, 1
          %s250 = scalar_select %p249, %s21, 1
          %p251 = scmp.lt.s32.totalorder %s248, 0
          %s252 = scalar_select %p251, %s248, 0
          %s253 = sadd.s32 %s252, %s250
          %s254 = smul.addr %s253, 4
          %s255 = scalar_lea.vmem %s2, %s254
          %p256 = scmp.lt.s32.totalorder %s23, %s22
          %s257 = scalar_select %p256, %s23, %s22
        $region36: #{masked_causal_attention.3} parent=23 // pred_fallthru
          _
      $region24: #{masked_causal_attention.3} parent=5 // pred_fallthru
        _
      %p258 = scmp.le.s32.totalorder 1, %s14
      %p259 = scmp.lt.s32.totalorder %s14, 3
      %p260 = pnand %p258, %p259
      %p261 = pneg %p260
      // Predicated region
      $region37: #{masked_causal_attention.3} parent=5 // pred_check
        _
      $region38: #{masked_causal_attention.3} parent=5 // pred_check_branch
        %263 = sbr.rel (%p260) target = $region40
      $region39: #{masked_causal_attention.3} parent=5 // pred_region
        %s264 = ssub.s32 %s14, 1
        %p265 = scmp.lt.s32.totalorder %s24, 1
        %s266 = scalar_select %p265, %s24, 1
        %p267 = scmp.lt.s32.totalorder %s25, 0
        %s268 = scalar_select %p267, %s25, 0
        %s269 = sadd.s32 %s268, %s266
        %s270 = smul.addr %s269, 4
        %s271 = scalar_lea.vmem %s0, %s270
        %p272 = pneg %p61
        %p273 = pneg %p58
        %p274 = scmp.lt.s32.totalorder %s26, %s25
        %s275 = scalar_select %p274, %s26, %s25
        %p276 = scmp.lt.s32.totalorder %s24, 1
        %s277 = scalar_select %p276, %s24, 1
        %p278 = scmp.lt.s32.totalorder %s275, 0
        %s279 = scalar_select %p278, %s275, 0
        %s280 = sadd.s32 %s279, %s277
        %s281 = smul.addr %s280, 4
        %s282 = scalar_lea.vmem %s1, %s281
        %p283 = pneg %p93
        %p284 = pneg %p90
        %p285 = scmp.lt.s32.totalorder %s26, %s25
        %s286 = scalar_select %p285, %s26, %s25
        %p287 = scmp.lt.s32.totalorder %s24, 1
        %s288 = scalar_select %p287, %s24, 1
        %p289 = scmp.lt.s32.totalorder %s286, 0
        %s290 = scalar_select %p289, %s286, 0
        %s291 = sadd.s32 %s290, %s288
        %s292 = smul.addr %s291, 4
        %s293 = scalar_lea.vmem %s2, %s292
        %p294 = pneg %p125
        %p295 = pneg %p122
        %p296 = pneg %p146
        %p297 = pneg %p143
        %p298 = pneg %p167
        %p299 = pneg %p164
        %p300 = pneg %p195
        %p301 = pneg %p192
        %s302 = sand.u32 %s182, 1
        %s303 = scalar_lea.sflag [#allocation6], %s302
        %s304 = sand.u32 %s182, 1
        %s305 = smul.addr %s304, 8
        %s306 = scalar_lea.vmem [#allocation5], %s305
        %p307 = scmp.lt.s32.totalorder %s24, 1
        %s308 = scalar_select %p307, %s24, 1
        %p309 = scmp.lt.s32.totalorder %s25, 0
        %s310 = scalar_select %p309, %s25, 0
        %s311 = sadd.s32 %s310, %s308
        %s312 = smul.addr %s311, 4
        %s313 = scalar_lea.vmem %s0, %s312
        %p314 = scmp.lt.s32.totalorder %s26, %s25
        %s315 = scalar_select %p314, %s26, %s25
        %p316 = scmp.lt.s32.totalorder %s24, 1
        %s317 = scalar_select %p316, %s24, 1
        %p318 = scmp.lt.s32.totalorder %s315, 0
        %s319 = scalar_select %p318, %s315, 0
        %s320 = sadd.s32 %s319, %s317
        %s321 = smul.addr %s320, 4
        %s322 = scalar_lea.vmem %s1, %s321
        %p323 = scmp.lt.s32.totalorder %s26, %s25
        %s324 = scalar_select %p323, %s26, %s25
        %p325 = scmp.lt.s32.totalorder %s26, %s25
        %s326 = scalar_select %p325, %s26, %s25
        %p327 = scmp.lt.s32.totalorder %s24, 1
        %s328 = scalar_select %p327, %s24, 1
        %p329 = scmp.lt.s32.totalorder %s326, 0
        %s330 = scalar_select %p329, %s326, 0
        %s331 = sadd.s32 %s330, %s328
        %s332 = smul.addr %s331, 4
        %s333 = scalar_lea.vmem %s2, %s332
        %p334 = scmp.lt.s32.totalorder %s26, %s25
        %s335 = scalar_select %p334, %s26, %s25
        %p337 = scmp.eq.s32.totalorder %s26, 0
        // Predicated region
        $region41: #{masked_causal_attention.3} parent=39 // pred_check
          %p338 = pneg %p337
        $region42: #{masked_causal_attention.3} parent=39 // pred_check_branch
          %340 = sbr.rel (%p338) target = $region44
        $region43: #{masked_causal_attention.3} parent=39 // pred_region
          %vm341 = vcmask 7168
          %342 = vst.msk [vmem:[#allocation2] sm:$0xff] %vm341, -1e+30
          %343 = vst.msk [vmem:[#allocation2 + $0x8] sm:$0xff] %vm341, -1e+30
          %344 = vst.msk [vmem:[#allocation3] sm:$0xff] %vm341, 0.0
          %345 = vst.msk [vmem:[#allocation3 + $0x8] sm:$0xff] %vm341, 0.0
          %vm346 = vcmask 130048
          %347 = vst.msk [vmem:[#allocation4] sm:$0xff] %vm346, 0.0
          %348 = vst.msk [vmem:[#allocation4 + $0x8] sm:$0xff] %vm346, 0.0
        $region44: #{masked_causal_attention.3} parent=39 // pred_fallthru
          _
        %p349 = scmp.lt.s32.totalorder %s26, %s25
        // Predicated region
        $region45: #{masked_causal_attention.3} parent=39 // pred_check
          %p350 = pneg %p349
        $region46: #{masked_causal_attention.3} parent=39 // pred_check_branch
          %352 = sbr.rel (%p350) target = $region48
        $region47: #{masked_causal_attention.3} parent=39 // pred_region
          %v353 = vld [vmem:[%s313] sm:$0xf]
          %v354 = vld [vmem:[%s322] sm:$0xf]
          %v355 = vld [vmem:[%s333] sm:$0xf]
          %vm356 = vcmask 130048
          %v358 = vsel %vm356, %v353, 0
          %v361 = vsel %vm356, %v354, 0
          %363 = vmatprep.subr.bf16.mxu0 0
          %364 = vmatpush1.bf16.xpose.msra.mxu0 %v361
          %365 = vmatprep.subr.bf16.mxu0 0
          %366 = vmatpush1.bf16.xpose.msra.mxu0 0
          %367 = vmatprep.subr.bf16.mxu0 0
          %368 = vmatpush1.bf16.xpose.msra.mxu0 0
          %369 = vmatprep.subr.bf16.mxu0 0
          %370 = vmatpush1.bf16.xpose.msra.mxu0 0
          %371 = vmatprep.subr.bf16.mxu0 0
          %372 = vmatpush1.bf16.xpose.msra.mxu0 0
          %373 = vmatprep.subr.bf16.mxu0 0
          %374 = vmatpush1.bf16.xpose.msra.mxu0 0
          %375 = vmatprep.subr.bf16.mxu0 0
          %376 = vmatpush1.bf16.xpose.msra.mxu0 0
          %377 = vmatprep.subr.bf16.mxu0 0
          %378 = vmatpush1.bf16.xpose.msra.mxu0 0
          %379 = vmatprep.subr.bf16.mxu0 0
          %380 = vmatpush1.bf16.xpose.msra.mxu0 0
          %381 = vmatprep.subr.bf16.mxu0 0
          %382 = vmatpush1.bf16.xpose.msra.mxu0 0
          %383 = vmatprep.subr.bf16.mxu0 0
          %384 = vmatpush1.bf16.xpose.msra.mxu0 0
          %385 = vmatprep.subr.bf16.mxu0 0
          %386 = vmatpush1.bf16.xpose.msra.mxu0 0
          %387 = vmatprep.subr.bf16.mxu0 0
          %388 = vmatpush1.bf16.xpose.msra.mxu0 0
          %389 = vmatprep.subr.bf16.mxu0 0
          %390 = vmatpush1.bf16.xpose.msra.mxu0 0
          %391 = vmatprep.subr.bf16.mxu0 0
          %392 = vmatpush1.bf16.xpose.msra.mxu0 0
          %393 = vmatprep.subr.bf16.mxu0 0
          %394 = vmatpush1.bf16.xpose.msra.mxu0 0
          %395 = vmatprep.mubr.bf16.mxu0 0
          %396 = vmatmul.mubr.bf16.gmra.mrb[0].mxu0 %v358
          %v397 = vpop.f32.mrb[0].mxu0
          %v398 = vadd.f32 0.0, %v397
          %v399 = vpop.f32.mrb[0].mxu0
          %v400 = vpop.f32.mrb[0].mxu0
          %v401 = vpop.f32.mrb[0].mxu0
          %402 = vdwg.mxu0
          %v403 = vld [vmem:[#allocation2] sm:$0xff]
          %vm404 = vcmask 64512
          %v405 = vsel %vm404, %v398, -inf
          %406 = vmax.xlane.f32.xlu0 %v405
          %v407 = vpop.xlane.xlu0 %406
          %v408 = vmax.f32 %v403, %v407
          %v409 = vsub.f32 %v403, %v408
          %v410 = vmul.f32 %v409, 1.442695
          %v411 = vpow.pop %v410
          %413 = vset.pattern.permute.xlu0 0
          %414 = vperm.xlu0 %413, %v408
          %v415 = vpop.permute.xlu0 %414
          %v417 = vsub.f32 %v398, %v415
          %v418 = vmul.f32 %v417, 1.442695
          %v419 = vpow.pop %v418
          %v420 = vld [vmem:[#allocation3] sm:$0xff]
          %v421 = vmul.f32 %v411, %v420
          %v422 = vsel %vm404, %v419, 0.0
          %423 = vadd.xlane.f32.xlu0 %v422
          %v424 = vpop.xlane.xlu0 %423
          %v425 = vadd.f32 %v421, %v424
          %vm426 = vcmask 7168
          %427 = vst.msk [vmem:[#allocation3] sm:$0xff] %vm426, %v425
          %v428 = vld [vmem:[#allocation4] sm:$0xff]
          %430 = vset.pattern.permute.xlu0 0
          %431 = vperm.xlu0 %430, %v411
          %v432 = vpop.permute.xlu0 %431
          %v434 = vmul.f32 %v432, %v428
          %v435 = vpack.c.bf16 %v419, %v419
          %v437 = vsel %vm404, %v435, 0
          %vm439 = vcmask 1043456
          %v441 = vsel %vm439, %v355, 0
          %443 = vmatprep.subr.bf16.mxu0 0
          %444 = vmatpush1.bf16.msra.mxu0 %v441
          %445 = vmatprep.subr.bf16.mxu0 0
          %446 = vmatpush1.bf16.msra.mxu0 0
          %447 = vmatprep.subr.bf16.mxu0 0
          %448 = vmatpush1.bf16.msra.mxu0 0
          %449 = vmatprep.subr.bf16.mxu0 0
          %450 = vmatpush1.bf16.msra.mxu0 0
          %451 = vmatprep.subr.bf16.mxu0 0
          %452 = vmatpush1.bf16.msra.mxu0 0
          %453 = vmatprep.subr.bf16.mxu0 0
          %454 = vmatpush1.bf16.msra.mxu0 0
          %455 = vmatprep.subr.bf16.mxu0 0
          %456 = vmatpush1.bf16.msra.mxu0 0
          %457 = vmatprep.subr.bf16.mxu0 0
          %458 = vmatpush1.bf16.msra.mxu0 0
          %459 = vmatprep.subr.bf16.mxu0 0
          %460 = vmatpush1.bf16.msra.mxu0 0
          %461 = vmatprep.subr.bf16.mxu0 0
          %462 = vmatpush1.bf16.msra.mxu0 0
          %463 = vmatprep.subr.bf16.mxu0 0
          %464 = vmatpush1.bf16.msra.mxu0 0
          %465 = vmatprep.subr.bf16.mxu0 0
          %466 = vmatpush1.bf16.msra.mxu0 0
          %467 = vmatprep.subr.bf16.mxu0 0
          %468 = vmatpush1.bf16.msra.mxu0 0
          %469 = vmatprep.subr.bf16.mxu0 0
          %470 = vmatpush1.bf16.msra.mxu0 0
          %471 = vmatprep.subr.bf16.mxu0 0
          %472 = vmatpush1.bf16.msra.mxu0 0
          %473 = vmatprep.subr.bf16.mxu0 0
          %474 = vmatpush1.bf16.msra.mxu0 0
          %475 = vmatprep.mubr.bf16.mxu0 0
          %476 = vmatmul.mubr.bf16.gmra.mrb[0].mxu0 %v437
          %v477 = vpop.f32.mrb[0].mxu0
          %v478 = vadd.f32 0.0, %v477
          %v479 = vpop.f32.mrb[0].mxu0
          %v480 = vpop.f32.mrb[0].mxu0
          %v481 = vpop.f32.mrb[0].mxu0
          %482 = vdwg.mxu0
          %v483 = vadd.f32 %v434, %v478
          %484 = vst.msk [vmem:[#allocation4] sm:$0xff] %vm356, %v483
          %485 = vst.msk [vmem:[#allocation2] sm:$0xff] %vm426, %v408
          %v486 = vld [vmem:[%s313] sm:$0xf]
          %v487 = vld [vmem:[%s322] sm:$0xf]
          %v488 = vld [vmem:[%s333] sm:$0xf]
          %v490 = vunpack.c.l.b16 %v486
          %v491 = vpack.c.b16 %v490, %v490
          %492 = vrot.lane.b32.xlu0 %v491, 112
          %v493 = vpop.permute.xlu0 %492
          %v495 = vunpack.c.l.b16 %v487
          %v496 = vpack.c.b16 %v495, %v495
          %497 = vrot.lane.b32.xlu0 %v496, 112
          %v498 = vpop.permute.xlu0 %497
          %v500 = vsel %vm356, %v493, 0
          %v503 = vsel %vm356, %v498, 0
          %505 = vmatprep.subr.bf16.mxu0 0
          %506 = vmatpush1.bf16.xpose.msra.mxu0 %v503
          %507 = vmatprep.subr.bf16.mxu0 0
          %508 = vmatpush1.bf16.xpose.msra.mxu0 0
          %509 = vmatprep.subr.bf16.mxu0 0
          %510 = vmatpush1.bf16.xpose.msra.mxu0 0
          %511 = vmatprep.subr.bf16.mxu0 0
          %512 = vmatpush1.bf16.xpose.msra.mxu0 0
          %513 = vmatprep.subr.bf16.mxu0 0
          %514 = vmatpush1.bf16.xpose.msra.mxu0 0
          %515 = vmatprep.subr.bf16.mxu0 0
          %516 = vmatpush1.bf16.xpose.msra.mxu0 0
          %517 = vmatprep.subr.bf16.mxu0 0
          %518 = vmatpush1.bf16.xpose.msra.mxu0 0
          %519 = vmatprep.subr.bf16.mxu0 0
          %520 = vmatpush1.bf16.xpose.msra.mxu0 0
          %521 = vmatprep.subr.bf16.mxu0 0
          %522 = vmatpush1.bf16.xpose.msra.mxu0 0
          %523 = vmatprep.subr.bf16.mxu0 0
          %524 = vmatpush1.bf16.xpose.msra.mxu0 0
          %525 = vmatprep.subr.bf16.mxu0 0
          %526 = vmatpush1.bf16.xpose.msra.mxu0 0
          %527 = vmatprep.subr.bf16.mxu0 0
          %528 = vmatpush1.bf16.xpose.msra.mxu0 0
          %529 = vmatprep.subr.bf16.mxu0 0
          %530 = vmatpush1.bf16.xpose.msra.mxu0 0
          %531 = vmatprep.subr.bf16.mxu0 0
          %532 = vmatpush1.bf16.xpose.msra.mxu0 0
          %533 = vmatprep.subr.bf16.mxu0 0
          %534 = vmatpush1.bf16.xpose.msra.mxu0 0
          %535 = vmatprep.subr.bf16.mxu0 0
          %536 = vmatpush1.bf16.xpose.msra.mxu0 0
          %537 = vmatprep.mubr.bf16.mxu0 0
          %538 = vmatmul.mubr.bf16.gmra.mrb[0].mxu0 %v500
          %v539 = vpop.f32.mrb[0].mxu0
          %v540 = vadd.f32 0.0, %v539
          %v541 = vpop.f32.mrb[0].mxu0
          %v542 = vpop.f32.mrb[0].mxu0
          %v543 = vpop.f32.mrb[0].mxu0
          %544 = vdwg.mxu0
          %s545 = scalar_lea.vmem [#allocation2], 8
          %v546 = vld [vmem:[%s545] sm:$0xff]
          %v547 = vsel %vm404, %v540, -inf
          %548 = vmax.xlane.f32.xlu0 %v547
          %v549 = vpop.xlane.xlu0 %548
          %v550 = vmax.f32 %v546, %v549
          %v551 = vsub.f32 %v546, %v550
          %v552 = vmul.f32 %v551, 1.442695
          %v553 = vpow.pop %v552
          %555 = vset.pattern.permute.xlu0 0
          %556 = vperm.xlu0 %555, %v550
          %v557 = vpop.permute.xlu0 %556
          %v559 = vsub.f32 %v540, %v557
          %v560 = vmul.f32 %v559, 1.442695
          %v561 = vpow.pop %v560
          %s562 = scalar_lea.vmem [#allocation3], 8
          %v563 = vld [vmem:[%s562] sm:$0xff]
          %v564 = vmul.f32 %v553, %v563
          %v565 = vsel %vm404, %v561, 0.0
          %566 = vadd.xlane.f32.xlu0 %v565
          %v567 = vpop.xlane.xlu0 %566
          %v568 = vadd.f32 %v564, %v567
          %569 = vst.msk [vmem:[%s562] sm:$0xff] %vm426, %v568
          %s570 = scalar_lea.vmem [#allocation4], 8
          %v571 = vld [vmem:[%s570] sm:$0xff]
          %573 = vset.pattern.permute.xlu0 0
          %574 = vperm.xlu0 %573, %v553
          %v575 = vpop.permute.xlu0 %574
          %v577 = vmul.f32 %v575, %v571
          %v578 = vpack.c.bf16 %v561, %v561
          %v580 = vunpack.c.l.b16 %v488
          %v581 = vpack.c.b16 %v580, %v580
          %582 = vrot.lane.b32.xlu0 %v581, 112
          %v583 = vpop.permute.xlu0 %582
          %v585 = vsel %vm404, %v578, 0
          %v588 = vsel %vm439, %v583, 0
          %590 = vmatprep.subr.bf16.mxu0 0
          %591 = vmatpush1.bf16.msra.mxu0 %v588
          %592 = vmatprep.subr.bf16.mxu0 0
          %593 = vmatpush1.bf16.msra.mxu0 0
          %594 = vmatprep.subr.bf16.mxu0 0
          %595 = vmatpush1.bf16.msra.mxu0 0
          %596 = vmatprep.subr.bf16.mxu0 0
          %597 = vmatpush1.bf16.msra.mxu0 0
          %598 = vmatprep.subr.bf16.mxu0 0
          %599 = vmatpush1.bf16.msra.mxu0 0
          %600 = vmatprep.subr.bf16.mxu0 0
          %601 = vmatpush1.bf16.msra.mxu0 0
          %602 = vmatprep.subr.bf16.mxu0 0
          %603 = vmatpush1.bf16.msra.mxu0 0
          %604 = vmatprep.subr.bf16.mxu0 0
          %605 = vmatpush1.bf16.msra.mxu0 0
          %606 = vmatprep.subr.bf16.mxu0 0
          %607 = vmatpush1.bf16.msra.mxu0 0
          %608 = vmatprep.subr.bf16.mxu0 0
          %609 = vmatpush1.bf16.msra.mxu0 0
          %610 = vmatprep.subr.bf16.mxu0 0
          %611 = vmatpush1.bf16.msra.mxu0 0
          %612 = vmatprep.subr.bf16.mxu0 0
          %613 = vmatpush1.bf16.msra.mxu0 0
          %614 = vmatprep.subr.bf16.mxu0 0
          %615 = vmatpush1.bf16.msra.mxu0 0
          %616 = vmatprep.subr.bf16.mxu0 0
          %617 = vmatpush1.bf16.msra.mxu0 0
          %618 = vmatprep.subr.bf16.mxu0 0
          %619 = vmatpush1.bf16.msra.mxu0 0
          %620 = vmatprep.subr.bf16.mxu0 0
          %621 = vmatpush1.bf16.msra.mxu0 0
          %622 = vmatprep.mubr.bf16.mxu0 0
          %623 = vmatmul.mubr.bf16.gmra.mrb[0].mxu0 %v585
          %v624 = vpop.f32.mrb[0].mxu0
          %v625 = vadd.f32 0.0, %v624
          %v626 = vpop.f32.mrb[0].mxu0
          %v627 = vpop.f32.mrb[0].mxu0
          %v628 = vpop.f32.mrb[0].mxu0
          %629 = vdwg.mxu0
          %v630 = vadd.f32 %v577, %v625
          %631 = vst.msk [vmem:[%s570] sm:$0xff] %vm356, %v630
          %632 = vst.msk [vmem:[%s545] sm:$0xff] %vm426, %v550
        $region48: #{masked_causal_attention.3} parent=39 // pred_fallthru
          _
        %p633 = scmp.eq.s32.totalorder %s26, %s25
        // Predicated region
        $region49: #{masked_causal_attention.3} parent=39 // pred_check
          %p634 = pneg %p633
        $region50: #{masked_causal_attention.3} parent=39 // pred_check_branch
          %636 = sbr.rel (%p634) target = $region52
        $region51: #{masked_causal_attention.3} parent=39 // pred_region
          %v637 = vlaneseq
          %v638 = vshrl.u32 %v637, 7
          %v639 = vlaneseq
          %v640 = vand.u32 %v639, 127
          %vm641 = vcmp.ge.s32.totalorder %v638, %v640
          %v642 = vld [vmem:[%s313] sm:$0xf]
          %v643 = vld [vmem:[%s322] sm:$0xf]
          %v644 = vld [vmem:[%s333] sm:$0xf]
          %vm645 = vcmask 130048
          %v647 = vsel %vm645, %v642, 0
          %v650 = vsel %vm645, %v643, 0
          %652 = vmatprep.subr.bf16.mxu0 0
          %653 = vmatpush1.bf16.xpose.msra.mxu0 %v650
          %654 = vmatprep.subr.bf16.mxu0 0
          %655 = vmatpush1.bf16.xpose.msra.mxu0 0
          %656 = vmatprep.subr.bf16.mxu0 0
          %657 = vmatpush1.bf16.xpose.msra.mxu0 0
          %658 = vmatprep.subr.bf16.mxu0 0
          %659 = vmatpush1.bf16.xpose.msra.mxu0 0
          %660 = vmatprep.subr.bf16.mxu0 0
          %661 = vmatpush1.bf16.xpose.msra.mxu0 0
          %662 = vmatprep.subr.bf16.mxu0 0
          %663 = vmatpush1.bf16.xpose.msra.mxu0 0
          %664 = vmatprep.subr.bf16.mxu0 0
          %665 = vmatpush1.bf16.xpose.msra.mxu0 0
          %666 = vmatprep.subr.bf16.mxu0 0
          %667 = vmatpush1.bf16.xpose.msra.mxu0 0
          %668 = vmatprep.subr.bf16.mxu0 0
          %669 = vmatpush1.bf16.xpose.msra.mxu0 0
          %670 = vmatprep.subr.bf16.mxu0 0
          %671 = vmatpush1.bf16.xpose.msra.mxu0 0
          %672 = vmatprep.subr.bf16.mxu0 0
          %673 = vmatpush1.bf16.xpose.msra.mxu0 0
          %674 = vmatprep.subr.bf16.mxu0 0
          %675 = vmatpush1.bf16.xpose.msra.mxu0 0
          %676 = vmatprep.subr.bf16.mxu0 0
          %677 = vmatpush1.bf16.xpose.msra.mxu0 0
          %678 = vmatprep.subr.bf16.mxu0 0
          %679 = vmatpush1.bf16.xpose.msra.mxu0 0
          %680 = vmatprep.subr.bf16.mxu0 0
          %681 = vmatpush1.bf16.xpose.msra.mxu0 0
          %682 = vmatprep.subr.bf16.mxu0 0
          %683 = vmatpush1.bf16.xpose.msra.mxu0 0
          %684 = vmatprep.mubr.bf16.mxu0 0
          %685 = vmatmul.mubr.bf16.gmra.mrb[0].mxu0 %v647
          %v686 = vpop.f32.mrb[0].mxu0
          %v687 = vadd.f32 0.0, %v686
          %v688 = vpop.f32.mrb[0].mxu0
          %v689 = vpop.f32.mrb[0].mxu0
          %v690 = vpop.f32.mrb[0].mxu0
          %691 = vdwg.mxu0
          %v692 = vsel %vm641, %v687, -1e+30
          %v693 = vld [vmem:[#allocation2] sm:$0xff]
          %vm694 = vcmask 64512
          %v695 = vsel %vm694, %v692, -inf
          %696 = vmax.xlane.f32.xlu0 %v695
          %v697 = vpop.xlane.xlu0 %696
          %v698 = vmax.f32 %v693, %v697
          %v699 = vsub.f32 %v693, %v698
          %v700 = vmul.f32 %v699, 1.442695
          %v701 = vpow.pop %v700
          %703 = vset.pattern.permute.xlu0 0
          %704 = vperm.xlu0 %703, %v698
          %v705 = vpop.permute.xlu0 %704
          %v707 = vsub.f32 %v692, %v705
          %v708 = vmul.f32 %v707, 1.442695
          %v709 = vpow.pop %v708
          %v710 = vld [vmem:[#allocation3] sm:$0xff]
          %v711 = vmul.f32 %v701, %v710
          %v712 = vsel %vm694, %v709, 0.0
          %713 = vadd.xlane.f32.xlu0 %v712
          %v714 = vpop.xlane.xlu0 %713
          %v715 = vadd.f32 %v711, %v714
          %vm716 = vcmask 7168
          %717 = vst.msk [vmem:[#allocation3] sm:$0xff] %vm716, %v715
          %v718 = vld [vmem:[#allocation4] sm:$0xff]
          %720 = vset.pattern.permute.xlu0 0
          %721 = vperm.xlu0 %720, %v701
          %v722 = vpop.permute.xlu0 %721
          %v724 = vmul.f32 %v722, %v718
          %v725 = vpack.c.bf16 %v709, %v709
          %v727 = vsel %vm694, %v725, 0
          %vm729 = vcmask 1043456
          %v731 = vsel %vm729, %v644, 0
          %733 = vmatprep.subr.bf16.mxu0 0
          %734 = vmatpush1.bf16.msra.mxu0 %v731
          %735 = vmatprep.subr.bf16.mxu0 0
          %736 = vmatpush1.bf16.msra.mxu0 0
          %737 = vmatprep.subr.bf16.mxu0 0
          %738 = vmatpush1.bf16.msra.mxu0 0
          %739 = vmatprep.subr.bf16.mxu0 0
          %740 = vmatpush1.bf16.msra.mxu0 0
          %741 = vmatprep.subr.bf16.mxu0 0
          %742 = vmatpush1.bf16.msra.mxu0 0
          %743 = vmatprep.subr.bf16.mxu0 0
          %744 = vmatpush1.bf16.msra.mxu0 0
          %745 = vmatprep.subr.bf16.mxu0 0
          %746 = vmatpush1.bf16.msra.mxu0 0
          %747 = vmatprep.subr.bf16.mxu0 0
          %748 = vmatpush1.bf16.msra.mxu0 0
          %749 = vmatprep.subr.bf16.mxu0 0
          %750 = vmatpush1.bf16.msra.mxu0 0
          %751 = vmatprep.subr.bf16.mxu0 0
          %752 = vmatpush1.bf16.msra.mxu0 0
          %753 = vmatprep.subr.bf16.mxu0 0
          %754 = vmatpush1.bf16.msra.mxu0 0
          %755 = vmatprep.subr.bf16.mxu0 0
          %756 = vmatpush1.bf16.msra.mxu0 0
          %757 = vmatprep.subr.bf16.mxu0 0
          %758 = vmatpush1.bf16.msra.mxu0 0
          %759 = vmatprep.subr.bf16.mxu0 0
          %760 = vmatpush1.bf16.msra.mxu0 0
          %761 = vmatprep.subr.bf16.mxu0 0
          %762 = vmatpush1.bf16.msra.mxu0 0
          %763 = vmatprep.subr.bf16.mxu0 0
          %764 = vmatpush1.bf16.msra.mxu0 0
          %765 = vmatprep.mubr.bf16.mxu0 0
          %766 = vmatmul.mubr.bf16.gmra.mrb[0].mxu0 %v727
          %v767 = vpop.f32.mrb[0].mxu0
          %v768 = vadd.f32 0.0, %v767
          %v769 = vpop.f32.mrb[0].mxu0
          %v770 = vpop.f32.mrb[0].mxu0
          %v771 = vpop.f32.mrb[0].mxu0
          %772 = vdwg.mxu0
          %v773 = vadd.f32 %v724, %v768
          %774 = vst.msk [vmem:[#allocation4] sm:$0xff] %vm645, %v773
          %775 = vst.msk [vmem:[#allocation2] sm:$0xff] %vm716, %v698
          %v776 = vld [vmem:[%s313] sm:$0xf]
          %v777 = vld [vmem:[%s322] sm:$0xf]
          %v778 = vld [vmem:[%s333] sm:$0xf]
          %v780 = vunpack.c.l.b16 %v776
          %v781 = vpack.c.b16 %v780, %v780
          %782 = vrot.lane.b32.xlu0 %v781, 112
          %v783 = vpop.permute.xlu0 %782
          %v785 = vunpack.c.l.b16 %v777
          %v786 = vpack.c.b16 %v785, %v785
          %787 = vrot.lane.b32.xlu0 %v786, 112
          %v788 = vpop.permute.xlu0 %787
          %v790 = vsel %vm645, %v783, 0
          %v793 = vsel %vm645, %v788, 0
          %795 = vmatprep.subr.bf16.mxu0 0
          %796 = vmatpush1.bf16.xpose.msra.mxu0 %v793
          %797 = vmatprep.subr.bf16.mxu0 0
          %798 = vmatpush1.bf16.xpose.msra.mxu0 0
          %799 = vmatprep.subr.bf16.mxu0 0
          %800 = vmatpush1.bf16.xpose.msra.mxu0 0
          %801 = vmatprep.subr.bf16.mxu0 0
          %802 = vmatpush1.bf16.xpose.msra.mxu0 0
          %803 = vmatprep.subr.bf16.mxu0 0
          %804 = vmatpush1.bf16.xpose.msra.mxu0 0
          %805 = vmatprep.subr.bf16.mxu0 0
          %806 = vmatpush1.bf16.xpose.msra.mxu0 0
          %807 = vmatprep.subr.bf16.mxu0 0
          %808 = vmatpush1.bf16.xpose.msra.mxu0 0
          %809 = vmatprep.subr.bf16.mxu0 0
          %810 = vmatpush1.bf16.xpose.msra.mxu0 0
          %811 = vmatprep.subr.bf16.mxu0 0
          %812 = vmatpush1.bf16.xpose.msra.mxu0 0
          %813 = vmatprep.subr.bf16.mxu0 0
          %814 = vmatpush1.bf16.xpose.msra.mxu0 0
          %815 = vmatprep.subr.bf16.mxu0 0
          %816 = vmatpush1.bf16.xpose.msra.mxu0 0
          %817 = vmatprep.subr.bf16.mxu0 0
          %818 = vmatpush1.bf16.xpose.msra.mxu0 0
          %819 = vmatprep.subr.bf16.mxu0 0
          %820 = vmatpush1.bf16.xpose.msra.mxu0 0
          %821 = vmatprep.subr.bf16.mxu0 0
          %822 = vmatpush1.bf16.xpose.msra.mxu0 0
          %823 = vmatprep.subr.bf16.mxu0 0
          %824 = vmatpush1.bf16.xpose.msra.mxu0 0
          %825 = vmatprep.subr.bf16.mxu0 0
          %826 = vmatpush1.bf16.xpose.msra.mxu0 0
          %827 = vmatprep.mubr.bf16.mxu0 0
          %828 = vmatmul.mubr.bf16.gmra.mrb[0].mxu0 %v790
          %v829 = vpop.f32.mrb[0].mxu0
          %v830 = vadd.f32 0.0, %v829
          %v831 = vpop.f32.mrb[0].mxu0
          %v832 = vpop.f32.mrb[0].mxu0
          %v833 = vpop.f32.mrb[0].mxu0
          %834 = vdwg.mxu0
          %v835 = vsel %vm641, %v830, -1e+30
          %s836 = scalar_lea.vmem [#allocation2], 8
          %v837 = vld [vmem:[%s836] sm:$0xff]
          %v838 = vsel %vm694, %v835, -inf
          %839 = vmax.xlane.f32.xlu0 %v838
          %v840 = vpop.xlane.xlu0 %839
          %v841 = vmax.f32 %v837, %v840
          %v842 = vsub.f32 %v837, %v841
          %v843 = vmul.f32 %v842, 1.442695
          %v844 = vpow.pop %v843
          %846 = vset.pattern.permute.xlu0 0
          %847 = vperm.xlu0 %846, %v841
          %v848 = vpop.permute.xlu0 %847
          %v850 = vsub.f32 %v835, %v848
          %v851 = vmul.f32 %v850, 1.442695
          %v852 = vpow.pop %v851
          %s853 = scalar_lea.vmem [#allocation3], 8
          %v854 = vld [vmem:[%s853] sm:$0xff]
          %v855 = vmul.f32 %v844, %v854
          %v856 = vsel %vm694, %v852, 0.0
          %857 = vadd.xlane.f32.xlu0 %v856
          %v858 = vpop.xlane.xlu0 %857
          %v859 = vadd.f32 %v855, %v858
          %860 = vst.msk [vmem:[%s853] sm:$0xff] %vm716, %v859
          %s861 = scalar_lea.vmem [#allocation4], 8
          %v862 = vld [vmem:[%s861] sm:$0xff]
          %864 = vset.pattern.permute.xlu0 0
          %865 = vperm.xlu0 %864, %v844
          %v866 = vpop.permute.xlu0 %865
          %v868 = vmul.f32 %v866, %v862
          %v869 = vpack.c.bf16 %v852, %v852
          %v871 = vunpack.c.l.b16 %v778
          %v872 = vpack.c.b16 %v871, %v871
          %873 = vrot.lane.b32.xlu0 %v872, 112
          %v874 = vpop.permute.xlu0 %873
          %v876 = vsel %vm694, %v869, 0
          %v879 = vsel %vm729, %v874, 0
          %881 = vmatprep.subr.bf16.mxu0 0
          %882 = vmatpush1.bf16.msra.mxu0 %v879
          %883 = vmatprep.subr.bf16.mxu0 0
          %884 = vmatpush1.bf16.msra.mxu0 0
          %885 = vmatprep.subr.bf16.mxu0 0
          %886 = vmatpush1.bf16.msra.mxu0 0
          %887 = vmatprep.subr.bf16.mxu0 0
          %888 = vmatpush1.bf16.msra.mxu0 0
          %889 = vmatprep.subr.bf16.mxu0 0
          %890 = vmatpush1.bf16.msra.mxu0 0
          %891 = vmatprep.subr.bf16.mxu0 0
          %892 = vmatpush1.bf16.msra.mxu0 0
          %893 = vmatprep.subr.bf16.mxu0 0
          %894 = vmatpush1.bf16.msra.mxu0 0
          %895 = vmatprep.subr.bf16.mxu0 0
          %896 = vmatpush1.bf16.msra.mxu0 0
          %897 = vmatprep.subr.bf16.mxu0 0
          %898 = vmatpush1.bf16.msra.mxu0 0
          %899 = vmatprep.subr.bf16.mxu0 0
          %900 = vmatpush1.bf16.msra.mxu0 0
          %901 = vmatprep.subr.bf16.mxu0 0
          %902 = vmatpush1.bf16.msra.mxu0 0
          %903 = vmatprep.subr.bf16.mxu0 0
          %904 = vmatpush1.bf16.msra.mxu0 0
          %905 = vmatprep.subr.bf16.mxu0 0
          %906 = vmatpush1.bf16.msra.mxu0 0
          %907 = vmatprep.subr.bf16.mxu0 0
          %908 = vmatpush1.bf16.msra.mxu0 0
          %909 = vmatprep.subr.bf16.mxu0 0
          %910 = vmatpush1.bf16.msra.mxu0 0
          %911 = vmatprep.subr.bf16.mxu0 0
          %912 = vmatpush1.bf16.msra.mxu0 0
          %913 = vmatprep.mubr.bf16.mxu0 0
          %914 = vmatmul.mubr.bf16.gmra.mrb[0].mxu0 %v876
          %v915 = vpop.f32.mrb[0].mxu0
          %v916 = vadd.f32 0.0, %v915
          %v917 = vpop.f32.mrb[0].mxu0
          %v918 = vpop.f32.mrb[0].mxu0
          %v919 = vpop.f32.mrb[0].mxu0
          %920 = vdwg.mxu0
          %v921 = vadd.f32 %v868, %v916
          %922 = vst.msk [vmem:[%s861] sm:$0xff] %vm645, %v921
          %923 = vst.msk [vmem:[%s836] sm:$0xff] %vm716, %v841
          %v924 = vld [vmem:[#allocation3] sm:$0xff]
          %v925 = vrcp.pop %v924
          %v926 = vmul.f32 1.0, %v925
          %v927 = vld [vmem:[#allocation4] sm:$0xff]
          %929 = vset.pattern.permute.xlu0 0
          %930 = vperm.xlu0 %929, %v926
          %v931 = vpop.permute.xlu0 %930
          %v933 = vmul.f32 %v927, %v931
          %v934 = vpack.c.bf16 %v933, %v933
          %v935 = vld [vmem:[%s3] sm:$0xf]
          %v936 = vld [vmem:[%s3 + $0x4] sm:$0xf]
          %v937 = vld [vmem:[%s853] sm:$0xff]
          %v938 = vrcp.pop %v937
          %v939 = vmul.f32 1.0, %v938
          %v940 = vld [vmem:[%s861] sm:$0xff]
          %942 = vset.pattern.permute.xlu0 0
          %943 = vperm.xlu0 %942, %v939
          %v944 = vpop.permute.xlu0 %943
          %v946 = vmul.f32 %v940, %v944
          %v947 = vpack.c.bf16 %v946, %v946
          %v948 = vld [vmem:[%s3 + $0x8] sm:$0xf]
          %v949 = vld [vmem:[%s3 + $0xc] sm:$0xf]
          %v952 = vunpack.c.l.b16 %v948
          %v953 = vunpack.c.l.b16 %v949
          %v954 = vpack.c.b16 %v953, %v952
          %v957 = vsel %vm645, %v947, 0
          %959 = vmatprep.subr.bf16.mxu0 0
          %960 = vmatpush1.bf16.msra.mxu0 %v954
          %961 = vmatprep.subr.bf16.mxu0 0
          %962 = vmatpush1.bf16.msra.mxu0 0
          %963 = vmatprep.subr.bf16.mxu0 0
          %964 = vmatpush1.bf16.msra.mxu0 0
          %965 = vmatprep.subr.bf16.mxu0 0
          %966 = vmatpush1.bf16.msra.mxu0 0
          %967 = vmatprep.subr.bf16.mxu0 0
          %968 = vmatpush1.bf16.msra.mxu0 0
          %969 = vmatprep.subr.bf16.mxu0 0
          %970 = vmatpush1.bf16.msra.mxu0 0
          %971 = vmatprep.subr.bf16.mxu0 0
          %972 = vmatpush1.bf16.msra.mxu0 0
          %973 = vmatprep.subr.bf16.mxu0 0
          %974 = vmatpush1.bf16.msra.mxu0 0
          %975 = vmatprep.subr.bf16.mxu0 0
          %976 = vmatpush1.bf16.msra.mxu0 0
          %977 = vmatprep.subr.bf16.mxu0 0
          %978 = vmatpush1.bf16.msra.mxu0 0
          %979 = vmatprep.subr.bf16.mxu0 0
          %980 = vmatpush1.bf16.msra.mxu0 0
          %981 = vmatprep.subr.bf16.mxu0 0
          %982 = vmatpush1.bf16.msra.mxu0 0
          %983 = vmatprep.subr.bf16.mxu0 0
          %984 = vmatpush1.bf16.msra.mxu0 0
          %985 = vmatprep.subr.bf16.mxu0 0
          %986 = vmatpush1.bf16.msra.mxu0 0
          %987 = vmatprep.subr.bf16.mxu0 0
          %988 = vmatpush1.bf16.msra.mxu0 0
          %989 = vmatprep.subr.bf16.mxu0 0
          %990 = vmatpush1.bf16.msra.mxu0 0
          %991 = vmatprep.mubr.bf16.mxu0 0
          %992 = vmatmul.mubr.bf16.gmra.mrb[0].mxu0 %v957
          %v993 = vpop.f32.mrb[0].mxu0
          %v994 = vadd.f32 0.0, %v993
          %v995 = vpop.f32.mrb[0].mxu0
          %v996 = vpop.f32.mrb[0].mxu0
          %v997 = vpop.f32.mrb[0].mxu0
          %998 = vdwg.mxu0
          %v1001 = vunpack.c.l.b16 %v935
          %v1002 = vunpack.c.l.b16 %v936
          %v1003 = vpack.c.b16 %v1002, %v1001
          %v1006 = vsel %vm645, %v934, 0
          %1008 = vmatprep.subr.bf16.mxu0 0
          %1009 = vmatpush1.bf16.msra.mxu0 %v1003
          %1010 = vmatprep.subr.bf16.mxu0 0
          %1011 = vmatpush1.bf16.msra.mxu0 0
          %1012 = vmatprep.subr.bf16.mxu0 0
          %1013 = vmatpush1.bf16.msra.mxu0 0
          %1014 = vmatprep.subr.bf16.mxu0 0
          %1015 = vmatpush1.bf16.msra.mxu0 0
          %1016 = vmatprep.subr.bf16.mxu0 0
          %1017 = vmatpush1.bf16.msra.mxu0 0
          %1018 = vmatprep.subr.bf16.mxu0 0
          %1019 = vmatpush1.bf16.msra.mxu0 0
          %1020 = vmatprep.subr.bf16.mxu0 0
          %1021 = vmatpush1.bf16.msra.mxu0 0
          %1022 = vmatprep.subr.bf16.mxu0 0
          %1023 = vmatpush1.bf16.msra.mxu0 0
          %1024 = vmatprep.subr.bf16.mxu0 0
          %1025 = vmatpush1.bf16.msra.mxu0 0
          %1026 = vmatprep.subr.bf16.mxu0 0
          %1027 = vmatpush1.bf16.msra.mxu0 0
          %1028 = vmatprep.subr.bf16.mxu0 0
          %1029 = vmatpush1.bf16.msra.mxu0 0
          %1030 = vmatprep.subr.bf16.mxu0 0
          %1031 = vmatpush1.bf16.msra.mxu0 0
          %1032 = vmatprep.subr.bf16.mxu0 0
          %1033 = vmatpush1.bf16.msra.mxu0 0
          %1034 = vmatprep.subr.bf16.mxu0 0
          %1035 = vmatpush1.bf16.msra.mxu0 0
          %1036 = vmatprep.subr.bf16.mxu0 0
          %1037 = vmatpush1.bf16.msra.mxu0 0
          %1038 = vmatprep.subr.bf16.mxu0 0
          %1039 = vmatpush1.bf16.msra.mxu0 0
          %1040 = vmatprep.mubr.bf16.mxu0 0
          %1041 = vmatmul.mubr.bf16.gmra.mrb[0].mxu0 %v1006
          %v1042 = vpop.f32.mrb[0].mxu0
          %v1043 = vadd.f32 %v994, %v1042
          %v1044 = vpop.f32.mrb[0].mxu0
          %v1045 = vpop.f32.mrb[0].mxu0
          %v1046 = vpop.f32.mrb[0].mxu0
          %1047 = vdwg.mxu0
          %v1048 = vld [vmem:[%s4] sm:$0x1]
          %v1050 = vlaneseq
          %v1051 = vshrl.u32 %v1050, 7
          %v1052 = vsub.s32 0, %v1051
          %v1053 = vrot.slane %v1048, %v1052
          %v1055 = vadd.f32 %v1043, %v1053
          %vm1056 = vcmask 261120
          %1057 = vst.msk [vmem:[%s306] sm:$0xff] %vm1056, %v1055
        $region52: #{masked_causal_attention.3} parent=39 // pred_fallthru
          _
        %s1058 = sand.u32 %s182, 1
        %s1059 = scalar_lea.sflag [#allocation6], %s1058
        %s1060 = sand.u32 %s182, 1
        %s1061 = smul.addr %s1060, 8
        %s1062 = scalar_lea.vmem [#allocation5], %s1061
        // Predicated region
        $region53: #{masked_causal_attention.3} parent=39 // pred_check
          %p1063 = pneg %p192
        $region54: #{masked_causal_attention.3} parent=39 // pred_check_branch
          %1065 = sbr.rel (%p1063) target = $region56
        $region55: #{masked_causal_attention.3} parent=39 // pred_region
          %s1067 = ssub.s32 128, 128
          %1068 = vsyncadd %s1059, %s1067
          %s1069 = sadd.s32 %s25, %s24
          %s1070 = smul.addr %s1069, 128
          %s1071 = scalar_lea.hbm %s5, %s1070
          %s1073 = sshll.u32 %s1062, 4
          %s1074 = int_to_ptr.vmem [resolvable:$true] %s1073
          %1076 = dma.vmem_to_hbm [thread:$0]  %s1074, 128, %s1071, %s1059
        $region56: #{masked_causal_attention.3} parent=39 // pred_fallthru
          _
      $region40: #{masked_causal_attention.3} parent=5 // pred_fallthru
        _
      %p1077 = scmp.le.s32.totalorder 2, %s14
      // Predicated region
      $region57: #{masked_causal_attention.3} parent=5 // pred_check
        %p1078 = pneg %p1077
      $region58: #{masked_causal_attention.3} parent=5 // pred_check_branch
        %1080 = sbr.rel (%p1078) target = $region60
      $region59: #{masked_causal_attention.3} parent=5 // pred_region
        %s1081 = ssub.s32 %s14, 2
        // Predicated region
        $region61: #{masked_causal_attention.3} parent=59 // pred_check
          %p1082 = pneg %p198
        $region62: #{masked_causal_attention.3} parent=59 // pred_check_branch
          %1084 = sbr.rel (%p1082) target = $region64
        $region63: #{masked_causal_attention.3} parent=59 // pred_region
          %s1085 = sand.u32 %s183, 1
          %s1086 = scalar_lea.sflag [#allocation6], %s1085
          %s1087 = sand.u32 %s183, 1
          %s1088 = smul.addr %s1087, 8
          %s1089 = scalar_lea.vmem [#allocation5], %s1088
          %1090 = dma.done %s1086, 128
        $region64: #{masked_causal_attention.3} parent=59 // pred_fallthru
          _
      $region60: #{masked_causal_attention.3} parent=5 // pred_fallthru
        _
    $region6: #{masked_causal_attention.3} parent=1 // loop_footer
      %s18 = sadd.s32 1, %s14
    $region7: #{masked_causal_attention.3} parent=1 // loop_footer_branch
      %13 = sbr.rel target = $region3
    $region8: #{masked_causal_attention.3} parent=1 // loop_exit
      _
    %1091 = vsyncpa [#allocation6], 1
    %s1092 = scalar_lea.sflag [#allocation6], 1
    %1093 = vsyncpa %s1092, 1

</llo_original>
